<compile_context>
chip_gen: v6e
topology: v6e:2x2x1
jax: 0.10.0
libtpu: 0.0.40
codegen_flags: <defaults>
</compile_context>

<pallas_src>
from functools import partial

import jax
import jax.numpy as jnp
from jax import lax
from jax.experimental import pallas as pl
from jax.experimental.pallas import tpu as pltpu

MATMUL_DTYPE = jnp.bfloat16   # MXU operand dtype (f32 accumulate everywhere)
BATCH_BLOCK = 8               # f32 sublane count; one grid step handles 8 batch rows


def _round_up(x, m):
    return (x + m - 1) // m * m


# --------------------------------------------------------------------------- #
# Kernel helpers
# --------------------------------------------------------------------------- #
def _gather_x(ids_ref, emb_ref, x_scratch, *, seq_len, block_batch, gather_rows):
    """In-kernel embedding gather into time-major VMEM scratch rows.

    emb_ref has shape (Vp, 1, Ep): the dynamic token index hits the untiled
    leading axis, so each row fetch is a cheap addressed load.
    """
    gb = pl.program_id(0)
    if gather_rows < block_batch:
        # Padded batch rows stay zero (they are sliced off by the wrapper).
        x_scratch[...] = jnp.zeros_like(x_scratch)
    for t in range(seq_len):                       # static loops: T*B rows, tiny
        for j in range(gather_rows):
            tok = ids_ref[gb * block_batch + j, t]
            x_scratch[pl.ds(t * block_batch + j, 1), :] = emb_ref[tok]


def _gate_math(gates, c, hidden):
    # PyTorch gate order [i, f, g, o]; all elementwise math in f32.
    H = hidden
    i_g = jax.nn.sigmoid(gates[:, 0 * H:1 * H])
    f_g = jax.nn.sigmoid(gates[:, 1 * H:2 * H])
    g_g = jnp.tanh(gates[:, 2 * H:3 * H])
    o_g = jax.nn.sigmoid(gates[:, 3 * H:4 * H])
    c_new = f_g * c + i_g * g_g
    h_new = o_g * jnp.tanh(c_new)
    return h_new, c_new


# --------------------------------------------------------------------------- #
# Kernels
# --------------------------------------------------------------------------- #
def lstm_fused_kernel(ids_ref, emb_ref, w_cat_ref, b_ref, w_fc_ref, b_fc_ref,
                      out_ref, x_scratch, *, seq_len, block_batch, gather_rows):
    """Fused path (v6e/v7x): per step one 256-deep matmul [x_t | h] @ [w_ih; w_hh]."""
    T, BB = seq_len, block_batch
    H = w_fc_ref.shape[0]

    _gather_x(ids_ref, emb_ref, x_scratch,
              seq_len=T, block_batch=BB, gather_rows=gather_rows)

    w_cat = w_cat_ref[...]                               # (Ep+H, 4H) bf16, resident
    bias = jnp.broadcast_to(b_ref[...], (BB, 4 * H))     # hoisted broadcast (f32)

    def step(t, carry):
        h, c = carry
        row = pl.multiple_of(t * BB, BB)
        x_t = x_scratch[pl.ds(row, BB), :]               # (BB, Ep) f32
        lhs = jnp.concatenate([x_t, h], axis=1).astype(w_cat.dtype)
        gates = jnp.dot(lhs, w_cat, preferred_element_type=jnp.float32) + bias
        return _gate_math(gates, c, H)

    h0 = jnp.zeros((BB, H), jnp.float32)
    c0 = jnp.zeros((BB, H), jnp.float32)
    # TODO(synk): for long sequences keep h in f32 (or bf16x3) for the recurrent
    # matmul operand; at T=8 the bf16 cast error is well within tolerance.
    h_last, _ = lax.fori_loop(0, T, step, (h0, c0), unroll=True)

    out_ref[...] = (jnp.dot(h_last.astype(w_fc_ref.dtype), w_fc_ref[...],
                            preferred_element_type=jnp.float32) + b_fc_ref[...])


def lstm_hoisted_kernel(ids_ref, emb_ref, w_ih_ref, w_hh_ref, b_ref, w_fc_ref,
                        b_fc_ref, out_ref, x_scratch, gates_scratch, *,
                        seq_len, block_batch, gather_rows):
    """Hoisted path (v5e / 128x128-MXU parts): x @ w_ih done once up front,
    only h @ w_hh on the serial per-step path; gates scratch held in bf16."""
    T, BB = seq_len, block_batch
    H = w_hh_ref.shape[0]

    _gather_x(ids_ref, emb_ref, x_scratch,
              seq_len=T, block_batch=BB, gather_rows=gather_rows)

    # One big MXU matmul for the input projection (bias folded in), bf16 scratch
    # halves the per-step VMEM load traffic.
    gates_scratch[...] = (
        jnp.dot(x_scratch[...].astype(MATMUL_DTYPE), w_ih_ref[...],
                preferred_element_type=jnp.float32)
        + b_ref[...]).astype(gates_scratch.dtype)

    # TODO(synk): if the bundle dump shows w_hh being re-pushed into the MXU
    # every step, stage it once with pltpu.matmul_push_rhs / matmul_acc_lhs.
    w_hh = w_hh_ref[...]                                 # (H, 4H) bf16, resident

    def step(t, carry):
        h, c = carry
        row = pl.multiple_of(t * BB, BB)
        gates = (gates_scratch[pl.ds(row, BB), :].astype(jnp.float32)
                 + jnp.dot(h.astype(w_hh.dtype), w_hh,
                           preferred_element_type=jnp.float32))
        return _gate_math(gates, c, H)

    h0 = jnp.zeros((BB, H), jnp.float32)
    c0 = jnp.zeros((BB, H), jnp.float32)
    h_last, _ = lax.fori_loop(0, T, step, (h0, c0), unroll=True)

    out_ref[...] = (jnp.dot(h_last.astype(w_fc_ref.dtype), w_fc_ref[...],
                            preferred_element_type=jnp.float32) + b_fc_ref[...])


# --------------------------------------------------------------------------- #
# Wrapper
# --------------------------------------------------------------------------- #
def prepare_params(params):
    """One-time padding / casting of weights into kernel-ready layouts."""
    emb, w_ih, w_hh = params["embedding"], params["w_ih"], params["w_hh"]
    b, w_fc, b_fc = params["b"], params["w_fc"], params["b_fc"]
    V, E = emb.shape
    H = w_hh.shape[0]
    C = w_fc.shape[1]
    Vp = _round_up(V, 8)
    Ep = _round_up(E, 128)
    Cp = _round_up(C, 128)

    emb_p = jnp.pad(emb, ((0, Vp - V), (0, Ep - E))).reshape(Vp, 1, Ep)
    w_ih_p = jnp.pad(w_ih, ((0, Ep - E), (0, 0))).astype(MATMUL_DTYPE)
    w_hh_p = w_hh.astype(MATMUL_DTYPE)
    w_cat = jnp.concatenate([w_ih_p, w_hh_p], axis=0)            # (Ep+H, 4H)
    w_fc_p = jnp.pad(w_fc, ((0, 0), (0, Cp - C))).astype(MATMUL_DTYPE)
    b_p = b.astype(jnp.float32)
    b_fc_p = jnp.pad(b_fc, ((0, 0), (0, Cp - C))).astype(jnp.float32)

    return {
        "emb": emb_p, "w_ih": w_ih_p, "w_hh": w_hh_p, "w_cat": w_cat,
        "b": b_p, "w_fc": w_fc_p, "b_fc": b_fc_p,
        "hidden_dim": H, "num_classes": C, "emb_dim_padded": Ep,
    }


def _mxu_prefers_fused():
    """256-deep fused contraction fills the 256x256 MXUs of v6e/v7x; older
    generations (128x128 MXUs, e.g. v5e) keep the hoisted input projection."""
    try:
        kind = jax.devices()[0].device_kind.lower()
    except Exception:
        return True
    return not any(v in kind for v in ("v2", "v3", "v4", "v5"))


def lstm_forward(token_ids, prepared, fused=None):
    """token_ids: (B, T) int32.  Returns logits (B, num_classes) float32."""
    if fused is None:
        fused = _mxu_prefers_fused()

    B, T = token_ids.shape
    H = prepared["hidden_dim"]
    C = prepared["num_classes"]
    Ep = prepared["emb_dim_padded"]
    Vp = prepared["emb"].shape[0]
    Cp = prepared["w_fc"].shape[1]

    BB = BATCH_BLOCK
    Bp = _round_up(B, BB)
    num_blocks = Bp // BB
    gather_rows = B if num_blocks == 1 else BB      # skip padded rows when possible

    ids = token_ids.astype(jnp.int32)
    if Bp != B:
        ids = jnp.pad(ids, ((0, Bp - B), (0, 0)))   # tiny; padded rows sliced off

    emb_spec = pl.BlockSpec((Vp, 1, Ep), lambda gb, ids: (0, 0, 0))
    b_spec = pl.BlockSpec((1, 4 * H), lambda gb, ids: (0, 0))
    w_fc_spec = pl.BlockSpec((H, Cp), lambda gb, ids: (0, 0))
    b_fc_spec = pl.BlockSpec((1, Cp), lambda gb, ids: (0, 0))
    out_spec = pl.BlockSpec((BB, Cp), lambda gb, ids: (gb, 0))

    if fused:
        kernel = partial(lstm_fused_kernel, seq_len=T, block_batch=BB,
                         gather_rows=gather_rows)
        in_specs = [
            emb_spec,
            pl.BlockSpec((Ep + H, 4 * H), lambda gb, ids: (0, 0)),   # [w_ih; w_hh]
            b_spec, w_fc_spec, b_fc_spec,
        ]
        scratch = [pltpu.VMEM((T * BB, Ep), jnp.float32)]            # gathered x
        operands = (ids, prepared["emb"], prepared["w_cat"], prepared["b"],
                    prepared["w_fc"], prepared["b_fc"])
    else:
        kernel = partial(lstm_hoisted_kernel, seq_len=T, block_batch=BB,
                         gather_rows=gather_rows)
        in_specs = [
            emb_spec,
            pl.BlockSpec((Ep, 4 * H), lambda gb, ids: (0, 0)),       # w_ih
            pl.BlockSpec((H, 4 * H), lambda gb, ids: (0, 0)),        # w_hh
            b_spec, w_fc_spec, b_fc_spec,
        ]
        scratch = [pltpu.VMEM((T * BB, Ep), jnp.float32),            # gathered x
                   pltpu.VMEM((T * BB, 4 * H), MATMUL_DTYPE)]        # hoisted gates
        operands = (ids, prepared["emb"], prepared["w_ih"], prepared["w_hh"],
                    prepared["b"], prepared["w_fc"], prepared["b_fc"])

    grid_spec = pltpu.PrefetchScalarGridSpec(
        num_scalar_prefetch=1,
        grid=(num_blocks,),                  # independent batch blocks
        in_specs=in_specs,
        out_specs=out_spec,
        scratch_shapes=scratch,
    )

    out = pl.pallas_call(
        kernel,
        out_shape=jax.ShapeDtypeStruct((Bp, Cp), jnp.float32),
        grid_spec=grid_spec,
        compiler_params=pltpu.CompilerParams(
            dimension_semantics=("parallel",)),   # batch blocks -> both TCs on v7x
    )(*operands)

    return out[:B, :C]


# --------------------------------------------------------------------------- #
# Pure-JAX reference & params
# --------------------------------------------------------------------------- #
def lstm_reference(token_ids, params):
    """Pure-JAX f32 reference (matches PyTorch LSTM forward semantics)."""
    emb = params["embedding"]
    w_ih, w_hh, b = params["w_ih"], params["w_hh"], params["b"]
    w_fc, b_fc = params["w_fc"], params["b_fc"]
    H = w_hh.shape[0]
    x = jnp.take(emb, token_ids, axis=0)               # (B, T, E)
    B, T, _ = x.shape
    h = jnp.zeros((B, H), jnp.float32)
    c = jnp.zeros((B, H), jnp.float32)
    for t in range(T):
        gates = x[:, t, :] @ w_ih + h @ w_hh + b
        i_g = jax.nn.sigmoid(gates[:, 0 * H:1 * H])
        f_g = jax.nn.sigmoid(gates[:, 1 * H:2 * H])
        g_g = jnp.tanh(gates[:, 2 * H:3 * H])
        o_g = jax.nn.sigmoid(gates[:, 3 * H:4 * H])
        c = f_g * c + i_g * g_g
        h = o_g * jnp.tanh(c)
    return h @ w_fc + b_fc


def init_params(key, vocab_size, embedding_dim, hidden_dim, num_classes):
    ks = jax.random.split(key, 6)
    scale = 0.1
    return {
        "embedding": scale * jax.random.normal(
            ks[0], (vocab_size, embedding_dim), jnp.float32),
        "w_ih": scale * jax.random.normal(
            ks[1], (embedding_dim, 4 * hidden_dim), jnp.float32),
        "w_hh": scale * jax.random.normal(
            ks[2], (hidden_dim, 4 * hidden_dim), jnp.float32),
        # combined b_ih + b_hh (PyTorch keeps two bias vectors; their sum is equivalent)
        "b": scale * jax.random.normal(
            ks[3], (1, 4 * hidden_dim), jnp.float32),
        "w_fc": scale * jax.random.normal(
            ks[4], (hidden_dim, num_classes), jnp.float32),
        "b_fc": scale * jax.random.normal(
            ks[5], (1, num_classes), jnp.float32),
    }


if __name__ == "__main__":
    vocab_size = 50
    embedding_dim = 100
    hidden_dim = 128
    num_classes = 8
    batch = 2
    seq_len = 8

    key = jax.random.PRNGKey(0)
    pkey, dkey = jax.random.split(key)
    params = init_params(pkey, vocab_size, embedding_dim, hidden_dim, num_classes)
    prepared = prepare_params(params)   # one-time weight padding/casting

    token_ids = jax.random.randint(dkey, (batch, seq_len), 0, vocab_size,
                                   dtype=jnp.int32)

    # Default (auto-selected) path.
    logits = lstm_forward(token_ids, prepared)
    jax.block_until_ready(logits)

    assert logits.shape == (batch, num_classes)
    assert logits.dtype == jnp.float32

    ref = lstm_reference(token_ids, params)
    assert jnp.allclose(logits, ref, atol=5e-2), (
        f"max abs diff {jnp.max(jnp.abs(logits - ref))}")

    # Exercise both kernel variants explicitly (fused 256-deep and hoisted).
    for fused in (True, False):
        out_v = lstm_forward(token_ids, prepared, fused=fused)
        jax.block_until_ready(out_v)
        assert jnp.allclose(out_v, ref, atol=5e-2), (
            f"fused={fused}: max abs diff {jnp.max(jnp.abs(out_v - ref))}")

    print("KERNEL_OK")
</pallas_src>

<mosaic_0001>
module attributes {stable_mosaic.version = 11 : i64} {
  func.func @lstm_fused_kernel(%arg0: i32, %arg1: memref<8x8xi32, #tpu.memory_space<smem>>, %arg2: memref<56x1x128xf32, #tpu.memory_space<vmem>>, %arg3: memref<256x512xbf16, #tpu.memory_space<vmem>>, %arg4: memref<1x512xf32, #tpu.memory_space<vmem>>, %arg5: memref<128x128xbf16, #tpu.memory_space<vmem>>, %arg6: memref<1x128xf32, #tpu.memory_space<vmem>>, %arg7: memref<8x128xf32, #tpu.memory_space<vmem>>, %arg8: memref<64x128xf32, #tpu.memory_space<vmem>>) attributes {dimension_semantics = [#tpu.dimension_semantics<parallel>], iteration_bounds = array<i64: 1>, scalar_prefetch = 1 : i64, scratch_operands = 1 : i64, tpu.core_type = #tpu.core_type<tc>, window_params = [{pipeline_mode = #tpu.pipeline_mode<synchronous>, transform_indices = @transform_0, window_bounds = array<i64: 56, 1, 128>}, {pipeline_mode = #tpu.pipeline_mode<synchronous>, transform_indices = @transform_1, window_bounds = array<i64: 256, 512>}, {pipeline_mode = #tpu.pipeline_mode<synchronous>, transform_indices = @transform_2, window_bounds = array<i64: 1, 512>}, {pipeline_mode = #tpu.pipeline_mode<synchronous>, transform_indices = @transform_3, window_bounds = array<i64: 128, 128>}, {pipeline_mode = #tpu.pipeline_mode<synchronous>, transform_indices = @transform_4, window_bounds = array<i64: 1, 128>}, {transform_indices = @transform_5, window_bounds = array<i64: 8, 128>}]} {
    %cst = arith.constant 0.000000e+00 : f32
    %0 = vector.broadcast %cst : f32 to vector<64x128xf32>
    %c0 = arith.constant 0 : index
    %c0_0 = arith.constant 0 : index
    %1 = vector.load %arg8[%c0, %c0_0] : memref<64x128xf32, #tpu.memory_space<vmem>>, vector<64x128xf32>
    tpu.vector_store %arg8[%c0, %c0_0], %0 {strides = array<i32>} : memref<64x128xf32, #tpu.memory_space<vmem>>, vector<64x128xf32>,
    %c8_i32 = arith.constant 8 : i32
    %2 = arith.muli %arg0, %c8_i32 : i32
    %c0_i32 = arith.constant 0 : i32
    %3 = arith.addi %2, %c0_i32 : i32
    %4 = arith.index_cast %3 : i32 to index
    %c0_1 = arith.constant 0 : index
    %5 = memref.load %arg1[%4, %c0_1] : memref<8x8xi32, #tpu.memory_space<smem>>
    %6 = arith.index_cast %5 : i32 to index
    %c0_2 = arith.constant 0 : index
    %c0_3 = arith.constant 0 : index
    %7 = vector.load %arg2[%6, %c0_2, %c0_3] : memref<56x1x128xf32, #tpu.memory_space<vmem>>, vector<1x1x128xf32>
    %8 = vector.shape_cast %7 : vector<1x1x128xf32> to vector<1x128xf32>
    %c0_4 = arith.constant 0 : index
    %c0_5 = arith.constant 0 : index
    %9 = vector.load %arg8[%c0_4, %c0_5] : memref<64x128xf32, #tpu.memory_space<vmem>>, vector<1x128xf32>
    tpu.vector_store %arg8[%c0_4, %c0_5], %8 {strides = array<i32>} : memref<64x128xf32, #tpu.memory_space<vmem>>, vector<1x128xf32>,
    %c8_i32_6 = arith.constant 8 : i32
    %10 = arith.muli %arg0, %c8_i32_6 : i32
    %c1_i32 = arith.constant 1 : i32
    %11 = arith.addi %10, %c1_i32 : i32
    %12 = arith.index_cast %11 : i32 to index
    %c0_7 = arith.constant 0 : index
    %13 = memref.load %arg1[%12, %c0_7] : memref<8x8xi32, #tpu.memory_space<smem>>
    %14 = arith.index_cast %13 : i32 to index
    %c0_8 = arith.constant 0 : index
    %c0_9 = arith.constant 0 : index
    %15 = vector.load %arg2[%14, %c0_8, %c0_9] : memref<56x1x128xf32, #tpu.memory_space<vmem>>, vector<1x1x128xf32>
    %16 = vector.shape_cast %15 : vector<1x1x128xf32> to vector<1x128xf32>
    %c1 = arith.constant 1 : index
    %c0_10 = arith.constant 0 : index
    %17 = vector.load %arg8[%c1, %c0_10] : memref<64x128xf32, #tpu.memory_space<vmem>>, vector<1x128xf32>
    tpu.vector_store %arg8[%c1, %c0_10], %16 {strides = array<i32>} : memref<64x128xf32, #tpu.memory_space<vmem>>, vector<1x128xf32>,
    %c8_i32_11 = arith.constant 8 : i32
    %18 = arith.muli %arg0, %c8_i32_11 : i32
    %c0_i32_12 = arith.constant 0 : i32
    %19 = arith.addi %18, %c0_i32_12 : i32
    %20 = arith.index_cast %19 : i32 to index
    %c1_13 = arith.constant 1 : index
    %21 = memref.load %arg1[%20, %c1_13] : memref<8x8xi32, #tpu.memory_space<smem>>
    %22 = arith.index_cast %21 : i32 to index
    %c0_14 = arith.constant 0 : index
    %c0_15 = arith.constant 0 : index
    %23 = vector.load %arg2[%22, %c0_14, %c0_15] : memref<56x1x128xf32, #tpu.memory_space<vmem>>, vector<1x1x128xf32>
    %24 = vector.shape_cast %23 : vector<1x1x128xf32> to vector<1x128xf32>
    %c8 = arith.constant 8 : index
    %c0_16 = arith.constant 0 : index
    %25 = vector.load %arg8[%c8, %c0_16] : memref<64x128xf32, #tpu.memory_space<vmem>>, vector<1x128xf32>
    tpu.vector_store %arg8[%c8, %c0_16], %24 {strides = array<i32>} : memref<64x128xf32, #tpu.memory_space<vmem>>, vector<1x128xf32>,
    %c8_i32_17 = arith.constant 8 : i32
    %26 = arith.muli %arg0, %c8_i32_17 : i32
    %c1_i32_18 = arith.constant 1 : i32
    %27 = arith.addi %26, %c1_i32_18 : i32
    %28 = arith.index_cast %27 : i32 to index
    %c1_19 = arith.constant 1 : index
    %29 = memref.load %arg1[%28, %c1_19] : memref<8x8xi32, #tpu.memory_space<smem>>
    %30 = arith.index_cast %29 : i32 to index
    %c0_20 = arith.constant 0 : index
    %c0_21 = arith.constant 0 : index
    %31 = vector.load %arg2[%30, %c0_20, %c0_21] : memref<56x1x128xf32, #tpu.memory_space<vmem>>, vector<1x1x128xf32>
    %32 = vector.shape_cast %31 : vector<1x1x128xf32> to vector<1x128xf32>
    %c9 = arith.constant 9 : index
    %c0_22 = arith.constant 0 : index
    %33 = vector.load %arg8[%c9, %c0_22] : memref<64x128xf32, #tpu.memory_space<vmem>>, vector<1x128xf32>
    tpu.vector_store %arg8[%c9, %c0_22], %32 {strides = array<i32>} : memref<64x128xf32, #tpu.memory_space<vmem>>, vector<1x128xf32>,
    %c8_i32_23 = arith.constant 8 : i32
    %34 = arith.muli %arg0, %c8_i32_23 : i32
    %c0_i32_24 = arith.constant 0 : i32
    %35 = arith.addi %34, %c0_i32_24 : i32
    %36 = arith.index_cast %35 : i32 to index
    %c2 = arith.constant 2 : index
    %37 = memref.load %arg1[%36, %c2] : memref<8x8xi32, #tpu.memory_space<smem>>
    %38 = arith.index_cast %37 : i32 to index
    %c0_25 = arith.constant 0 : index
    %c0_26 = arith.constant 0 : index
    %39 = vector.load %arg2[%38, %c0_25, %c0_26] : memref<56x1x128xf32, #tpu.memory_space<vmem>>, vector<1x1x128xf32>
    %40 = vector.shape_cast %39 : vector<1x1x128xf32> to vector<1x128xf32>
    %c16 = arith.constant 16 : index
    %c0_27 = arith.constant 0 : index
    %41 = vector.load %arg8[%c16, %c0_27] : memref<64x128xf32, #tpu.memory_space<vmem>>, vector<1x128xf32>
    tpu.vector_store %arg8[%c16, %c0_27], %40 {strides = array<i32>} : memref<64x128xf32, #tpu.memory_space<vmem>>, vector<1x128xf32>,
    %c8_i32_28 = arith.constant 8 : i32
    %42 = arith.muli %arg0, %c8_i32_28 : i32
    %c1_i32_29 = arith.constant 1 : i32
    %43 = arith.addi %42, %c1_i32_29 : i32
    %44 = arith.index_cast %43 : i32 to index
    %c2_30 = arith.constant 2 : index
    %45 = memref.load %arg1[%44, %c2_30] : memref<8x8xi32, #tpu.memory_space<smem>>
    %46 = arith.index_cast %45 : i32 to index
    %c0_31 = arith.constant 0 : index
    %c0_32 = arith.constant 0 : index
    %47 = vector.load %arg2[%46, %c0_31, %c0_32] : memref<56x1x128xf32, #tpu.memory_space<vmem>>, vector<1x1x128xf32>
    %48 = vector.shape_cast %47 : vector<1x1x128xf32> to vector<1x128xf32>
    %c17 = arith.constant 17 : index
    %c0_33 = arith.constant 0 : index
    %49 = vector.load %arg8[%c17, %c0_33] : memref<64x128xf32, #tpu.memory_space<vmem>>, vector<1x128xf32>
    tpu.vector_store %arg8[%c17, %c0_33], %48 {strides = array<i32>} : memref<64x128xf32, #tpu.memory_space<vmem>>, vector<1x128xf32>,
    %c8_i32_34 = arith.constant 8 : i32
    %50 = arith.muli %arg0, %c8_i32_34 : i32
    %c0_i32_35 = arith.constant 0 : i32
    %51 = arith.addi %50, %c0_i32_35 : i32
    %52 = arith.index_cast %51 : i32 to index
    %c3 = arith.constant 3 : index
    %53 = memref.load %arg1[%52, %c3] : memref<8x8xi32, #tpu.memory_space<smem>>
    %54 = arith.index_cast %53 : i32 to index
    %c0_36 = arith.constant 0 : index
    %c0_37 = arith.constant 0 : index
    %55 = vector.load %arg2[%54, %c0_36, %c0_37] : memref<56x1x128xf32, #tpu.memory_space<vmem>>, vector<1x1x128xf32>
    %56 = vector.shape_cast %55 : vector<1x1x128xf32> to vector<1x128xf32>
    %c24 = arith.constant 24 : index
    %c0_38 = arith.constant 0 : index
    %57 = vector.load %arg8[%c24, %c0_38] : memref<64x128xf32, #tpu.memory_space<vmem>>, vector<1x128xf32>
    tpu.vector_store %arg8[%c24, %c0_38], %56 {strides = array<i32>} : memref<64x128xf32, #tpu.memory_space<vmem>>, vector<1x128xf32>,
    %c8_i32_39 = arith.constant 8 : i32
    %58 = arith.muli %arg0, %c8_i32_39 : i32
    %c1_i32_40 = arith.constant 1 : i32
    %59 = arith.addi %58, %c1_i32_40 : i32
    %60 = arith.index_cast %59 : i32 to index
    %c3_41 = arith.constant 3 : index
    %61 = memref.load %arg1[%60, %c3_41] : memref<8x8xi32, #tpu.memory_space<smem>>
    %62 = arith.index_cast %61 : i32 to index
    %c0_42 = arith.constant 0 : index
    %c0_43 = arith.constant 0 : index
    %63 = vector.load %arg2[%62, %c0_42, %c0_43] : memref<56x1x128xf32, #tpu.memory_space<vmem>>, vector<1x1x128xf32>
    %64 = vector.shape_cast %63 : vector<1x1x128xf32> to vector<1x128xf32>
    %c25 = arith.constant 25 : index
    %c0_44 = arith.constant 0 : index
    %65 = vector.load %arg8[%c25, %c0_44] : memref<64x128xf32, #tpu.memory_space<vmem>>, vector<1x128xf32>
    tpu.vector_store %arg8[%c25, %c0_44], %64 {strides = array<i32>} : memref<64x128xf32, #tpu.memory_space<vmem>>, vector<1x128xf32>,
    %c8_i32_45 = arith.constant 8 : i32
    %66 = arith.muli %arg0, %c8_i32_45 : i32
    %c0_i32_46 = arith.constant 0 : i32
    %67 = arith.addi %66, %c0_i32_46 : i32
    %68 = arith.index_cast %67 : i32 to index
    %c4 = arith.constant 4 : index
    %69 = memref.load %arg1[%68, %c4] : memref<8x8xi32, #tpu.memory_space<smem>>
    %70 = arith.index_cast %69 : i32 to index
    %c0_47 = arith.constant 0 : index
    %c0_48 = arith.constant 0 : index
    %71 = vector.load %arg2[%70, %c0_47, %c0_48] : memref<56x1x128xf32, #tpu.memory_space<vmem>>, vector<1x1x128xf32>
    %72 = vector.shape_cast %71 : vector<1x1x128xf32> to vector<1x128xf32>
    %c32 = arith.constant 32 : index
    %c0_49 = arith.constant 0 : index
    %73 = vector.load %arg8[%c32, %c0_49] : memref<64x128xf32, #tpu.memory_space<vmem>>, vector<1x128xf32>
    tpu.vector_store %arg8[%c32, %c0_49], %72 {strides = array<i32>} : memref<64x128xf32, #tpu.memory_space<vmem>>, vector<1x128xf32>,
    %c8_i32_50 = arith.constant 8 : i32
    %74 = arith.muli %arg0, %c8_i32_50 : i32
    %c1_i32_51 = arith.constant 1 : i32
    %75 = arith.addi %74, %c1_i32_51 : i32
    %76 = arith.index_cast %75 : i32 to index
    %c4_52 = arith.constant 4 : index
    %77 = memref.load %arg1[%76, %c4_52] : memref<8x8xi32, #tpu.memory_space<smem>>
    %78 = arith.index_cast %77 : i32 to index
    %c0_53 = arith.constant 0 : index
    %c0_54 = arith.constant 0 : index
    %79 = vector.load %arg2[%78, %c0_53, %c0_54] : memref<56x1x128xf32, #tpu.memory_space<vmem>>, vector<1x1x128xf32>
    %80 = vector.shape_cast %79 : vector<1x1x128xf32> to vector<1x128xf32>
    %c33 = arith.constant 33 : index
    %c0_55 = arith.constant 0 : index
    %81 = vector.load %arg8[%c33, %c0_55] : memref<64x128xf32, #tpu.memory_space<vmem>>, vector<1x128xf32>
    tpu.vector_store %arg8[%c33, %c0_55], %80 {strides = array<i32>} : memref<64x128xf32, #tpu.memory_space<vmem>>, vector<1x128xf32>,
    %c8_i32_56 = arith.constant 8 : i32
    %82 = arith.muli %arg0, %c8_i32_56 : i32
    %c0_i32_57 = arith.constant 0 : i32
    %83 = arith.addi %82, %c0_i32_57 : i32
    %84 = arith.index_cast %83 : i32 to index
    %c5 = arith.constant 5 : index
    %85 = memref.load %arg1[%84, %c5] : memref<8x8xi32, #tpu.memory_space<smem>>
    %86 = arith.index_cast %85 : i32 to index
    %c0_58 = arith.constant 0 : index
    %c0_59 = arith.constant 0 : index
    %87 = vector.load %arg2[%86, %c0_58, %c0_59] : memref<56x1x128xf32, #tpu.memory_space<vmem>>, vector<1x1x128xf32>
    %88 = vector.shape_cast %87 : vector<1x1x128xf32> to vector<1x128xf32>
    %c40 = arith.constant 40 : index
    %c0_60 = arith.constant 0 : index
    %89 = vector.load %arg8[%c40, %c0_60] : memref<64x128xf32, #tpu.memory_space<vmem>>, vector<1x128xf32>
    tpu.vector_store %arg8[%c40, %c0_60], %88 {strides = array<i32>} : memref<64x128xf32, #tpu.memory_space<vmem>>, vector<1x128xf32>,
    %c8_i32_61 = arith.constant 8 : i32
    %90 = arith.muli %arg0, %c8_i32_61 : i32
    %c1_i32_62 = arith.constant 1 : i32
    %91 = arith.addi %90, %c1_i32_62 : i32
    %92 = arith.index_cast %91 : i32 to index
    %c5_63 = arith.constant 5 : index
    %93 = memref.load %arg1[%92, %c5_63] : memref<8x8xi32, #tpu.memory_space<smem>>
    %94 = arith.index_cast %93 : i32 to index
    %c0_64 = arith.constant 0 : index
    %c0_65 = arith.constant 0 : index
    %95 = vector.load %arg2[%94, %c0_64, %c0_65] : memref<56x1x128xf32, #tpu.memory_space<vmem>>, vector<1x1x128xf32>
    %96 = vector.shape_cast %95 : vector<1x1x128xf32> to vector<1x128xf32>
    %c41 = arith.constant 41 : index
    %c0_66 = arith.constant 0 : index
    %97 = vector.load %arg8[%c41, %c0_66] : memref<64x128xf32, #tpu.memory_space<vmem>>, vector<1x128xf32>
    tpu.vector_store %arg8[%c41, %c0_66], %96 {strides = array<i32>} : memref<64x128xf32, #tpu.memory_space<vmem>>, vector<1x128xf32>,
    %c8_i32_67 = arith.constant 8 : i32
    %98 = arith.muli %arg0, %c8_i32_67 : i32
    %c0_i32_68 = arith.constant 0 : i32
    %99 = arith.addi %98, %c0_i32_68 : i32
    %100 = arith.index_cast %99 : i32 to index
    %c6 = arith.constant 6 : index
    %101 = memref.load %arg1[%100, %c6] : memref<8x8xi32, #tpu.memory_space<smem>>
    %102 = arith.index_cast %101 : i32 to index
    %c0_69 = arith.constant 0 : index
    %c0_70 = arith.constant 0 : index
    %103 = vector.load %arg2[%102, %c0_69, %c0_70] : memref<56x1x128xf32, #tpu.memory_space<vmem>>, vector<1x1x128xf32>
    %104 = vector.shape_cast %103 : vector<1x1x128xf32> to vector<1x128xf32>
    %c48 = arith.constant 48 : index
    %c0_71 = arith.constant 0 : index
    %105 = vector.load %arg8[%c48, %c0_71] : memref<64x128xf32, #tpu.memory_space<vmem>>, vector<1x128xf32>
    tpu.vector_store %arg8[%c48, %c0_71], %104 {strides = array<i32>} : memref<64x128xf32, #tpu.memory_space<vmem>>, vector<1x128xf32>,
    %c8_i32_72 = arith.constant 8 : i32
    %106 = arith.muli %arg0, %c8_i32_72 : i32
    %c1_i32_73 = arith.constant 1 : i32
    %107 = arith.addi %106, %c1_i32_73 : i32
    %108 = arith.index_cast %107 : i32 to index
    %c6_74 = arith.constant 6 : index
    %109 = memref.load %arg1[%108, %c6_74] : memref<8x8xi32, #tpu.memory_space<smem>>
    %110 = arith.index_cast %109 : i32 to index
    %c0_75 = arith.constant 0 : index
    %c0_76 = arith.constant 0 : index
    %111 = vector.load %arg2[%110, %c0_75, %c0_76] : memref<56x1x128xf32, #tpu.memory_space<vmem>>, vector<1x1x128xf32>
    %112 = vector.shape_cast %111 : vector<1x1x128xf32> to vector<1x128xf32>
    %c49 = arith.constant 49 : index
    %c0_77 = arith.constant 0 : index
    %113 = vector.load %arg8[%c49, %c0_77] : memref<64x128xf32, #tpu.memory_space<vmem>>, vector<1x128xf32>
    tpu.vector_store %arg8[%c49, %c0_77], %112 {strides = array<i32>} : memref<64x128xf32, #tpu.memory_space<vmem>>, vector<1x128xf32>,
    %c8_i32_78 = arith.constant 8 : i32
    %114 = arith.muli %arg0, %c8_i32_78 : i32
    %c0_i32_79 = arith.constant 0 : i32
    %115 = arith.addi %114, %c0_i32_79 : i32
    %116 = arith.index_cast %115 : i32 to index
    %c7 = arith.constant 7 : index
    %117 = memref.load %arg1[%116, %c7] : memref<8x8xi32, #tpu.memory_space<smem>>
    %118 = arith.index_cast %117 : i32 to index
    %c0_80 = arith.constant 0 : index
    %c0_81 = arith.constant 0 : index
    %119 = vector.load %arg2[%118, %c0_80, %c0_81] : memref<56x1x128xf32, #tpu.memory_space<vmem>>, vector<1x1x128xf32>
    %120 = vector.shape_cast %119 : vector<1x1x128xf32> to vector<1x128xf32>
    %c56 = arith.constant 56 : index
    %c0_82 = arith.constant 0 : index
    %121 = vector.load %arg8[%c56, %c0_82] : memref<64x128xf32, #tpu.memory_space<vmem>>, vector<1x128xf32>
    tpu.vector_store %arg8[%c56, %c0_82], %120 {strides = array<i32>} : memref<64x128xf32, #tpu.memory_space<vmem>>, vector<1x128xf32>,
    %c8_i32_83 = arith.constant 8 : i32
    %122 = arith.muli %arg0, %c8_i32_83 : i32
    %c1_i32_84 = arith.constant 1 : i32
    %123 = arith.addi %122, %c1_i32_84 : i32
    %124 = arith.index_cast %123 : i32 to index
    %c7_85 = arith.constant 7 : index
    %125 = memref.load %arg1[%124, %c7_85] : memref<8x8xi32, #tpu.memory_space<smem>>
    %126 = arith.index_cast %125 : i32 to index
    %c0_86 = arith.constant 0 : index
    %c0_87 = arith.constant 0 : index
    %127 = vector.load %arg2[%126, %c0_86, %c0_87] : memref<56x1x128xf32, #tpu.memory_space<vmem>>, vector<1x1x128xf32>
    %128 = vector.shape_cast %127 : vector<1x1x128xf32> to vector<1x128xf32>
    %c57 = arith.constant 57 : index
    %c0_88 = arith.constant 0 : index
    %129 = vector.load %arg8[%c57, %c0_88] : memref<64x128xf32, #tpu.memory_space<vmem>>, vector<1x128xf32>
    tpu.vector_store %arg8[%c57, %c0_88], %128 {strides = array<i32>} : memref<64x128xf32, #tpu.memory_space<vmem>>, vector<1x128xf32>,
    %c0_89 = arith.constant 0 : index
    %c0_90 = arith.constant 0 : index
    %130 = vector.load %arg3[%c0_89, %c0_90] : memref<256x512xbf16, #tpu.memory_space<vmem>>, vector<256x512xbf16>
    %c0_91 = arith.constant 0 : index
    %c0_92 = arith.constant 0 : index
    %131 = vector.load %arg4[%c0_91, %c0_92] : memref<1x512xf32, #tpu.memory_space<vmem>>, vector<1x512xf32>
    %132 = vector.shape_cast %131 : vector<1x512xf32> to vector<1x512xf32>
    %133 = vector.broadcast %132 : vector<1x512xf32> to vector<8x512xf32>
    %cst_93 = arith.constant 0.000000e+00 : f32
    %134 = vector.broadcast %cst_93 : f32 to vector<8x128xf32>
    %cst_94 = arith.constant 0.000000e+00 : f32
    %135 = vector.broadcast %cst_94 : f32 to vector<8x128xf32>
    %c0_i32_95 = arith.constant 0 : i32
    %c8_i32_96 = arith.constant 8 : i32
    %136 = arith.muli %c0_i32_95, %c8_i32_96 : i32
    %137 = tpu.assume_multiple %136, 8 : i32
    %138 = arith.index_cast %137 : i32 to index
    %c0_97 = arith.constant 0 : index
    %139 = vector.load %arg8[%138, %c0_97] : memref<64x128xf32, #tpu.memory_space<vmem>>, vector<8x128xf32>
    %140 = tpu.concatenate %139, %134 in 1 : vector<8x128xf32>, vector<8x128xf32> -> vector<8x256xf32>
    %141 = arith.truncf %140 : vector<8x256xf32> to vector<8x256xbf16>
    %cst_98 = arith.constant dense<0.000000e+00> : vector<8x512xf32>
    %142 = tpu.matmul %141, %130, %cst_98 {dimension_numbers = #tpu.dot_dimension_numbers<[1], [0], [0], [1], [0, 0, 1, 1], [], []>} : vector<8x256xbf16>, vector<256x512xbf16>, vector<8x512xf32> -> vector<8x512xf32>
    %143 = arith.addf %142, %133 : vector<8x512xf32>
    %144 = vector.extract_strided_slice %143 {offsets = [0, 0], sizes = [8, 128], strides = [1, 1]} : vector<8x512xf32> to vector<8x128xf32>
    %145 = arith.negf %144 : vector<8x128xf32>
    %146 = math.exp %145 : vector<8x128xf32>
    %cst_99 = arith.constant 1.000000e+00 : f32
    %147 = vector.broadcast %cst_99 : f32 to vector<8x128xf32>
    %148 = arith.addf %147, %146 : vector<8x128xf32>
    %149 = arith.divf %147, %148 : vector<8x128xf32>
    %150 = vector.extract_strided_slice %143 {offsets = [0, 128], sizes = [8, 128], strides = [1, 1]} : vector<8x512xf32> to vector<8x128xf32>
    %151 = arith.negf %150 : vector<8x128xf32>
    %152 = math.exp %151 : vector<8x128xf32>
    %cst_100 = arith.constant 1.000000e+00 : f32
    %153 = vector.broadcast %cst_100 : f32 to vector<8x128xf32>
    %154 = arith.addf %153, %152 : vector<8x128xf32>
    %155 = arith.divf %153, %154 : vector<8x128xf32>
    %156 = vector.extract_strided_slice %143 {offsets = [0, 256], sizes = [8, 128], strides = [1, 1]} : vector<8x512xf32> to vector<8x128xf32>
    %157 = math.tanh %156 : vector<8x128xf32>
    %158 = vector.extract_strided_slice %143 {offsets = [0, 384], sizes = [8, 128], strides = [1, 1]} : vector<8x512xf32> to vector<8x128xf32>
    %159 = arith.negf %158 : vector<8x128xf32>
    %160 = math.exp %159 : vector<8x128xf32>
    %cst_101 = arith.constant 1.000000e+00 : f32
    %161 = vector.broadcast %cst_101 : f32 to vector<8x128xf32>
    %162 = arith.addf %161, %160 : vector<8x128xf32>
    %163 = arith.divf %161, %162 : vector<8x128xf32>
    %164 = arith.mulf %155, %135 : vector<8x128xf32>
    %165 = arith.mulf %149, %157 : vector<8x128xf32>
    %166 = arith.addf %164, %165 : vector<8x128xf32>
    %167 = math.tanh %166 : vector<8x128xf32>
    %168 = arith.mulf %163, %167 : vector<8x128xf32>
    %c1_i32_102 = arith.constant 1 : i32
    %c8_i32_103 = arith.constant 8 : i32
    %169 = arith.muli %c1_i32_102, %c8_i32_103 : i32
    %170 = tpu.assume_multiple %169, 8 : i32
    %171 = arith.index_cast %170 : i32 to index
    %c0_104 = arith.constant 0 : index
    %172 = vector.load %arg8[%171, %c0_104] : memref<64x128xf32, #tpu.memory_space<vmem>>, vector<8x128xf32>
    %173 = tpu.concatenate %172, %168 in 1 : vector<8x128xf32>, vector<8x128xf32> -> vector<8x256xf32>
    %174 = arith.truncf %173 : vector<8x256xf32> to vector<8x256xbf16>
    %cst_105 = arith.constant dense<0.000000e+00> : vector<8x512xf32>
    %175 = tpu.matmul %174, %130, %cst_105 {dimension_numbers = #tpu.dot_dimension_numbers<[1], [0], [0], [1], [0, 0, 1, 1], [], []>} : vector<8x256xbf16>, vector<256x512xbf16>, vector<8x512xf32> -> vector<8x512xf32>
    %176 = arith.addf %175, %133 : vector<8x512xf32>
    %177 = vector.extract_strided_slice %176 {offsets = [0, 0], sizes = [8, 128], strides = [1, 1]} : vector<8x512xf32> to vector<8x128xf32>
    %178 = arith.negf %177 : vector<8x128xf32>
    %179 = math.exp %178 : vector<8x128xf32>
    %cst_106 = arith.constant 1.000000e+00 : f32
    %180 = vector.broadcast %cst_106 : f32 to vector<8x128xf32>
    %181 = arith.addf %180, %179 : vector<8x128xf32>
    %182 = arith.divf %180, %181 : vector<8x128xf32>
    %183 = vector.extract_strided_slice %176 {offsets = [0, 128], sizes = [8, 128], strides = [1, 1]} : vector<8x512xf32> to vector<8x128xf32>
    %184 = arith.negf %183 : vector<8x128xf32>
    %185 = math.exp %184 : vector<8x128xf32>
    %cst_107 = arith.constant 1.000000e+00 : f32
    %186 = vector.broadcast %cst_107 : f32 to vector<8x128xf32>
    %187 = arith.addf %186, %185 : vector<8x128xf32>
    %188 = arith.divf %186, %187 : vector<8x128xf32>
    %189 = vector.extract_strided_slice %176 {offsets = [0, 256], sizes = [8, 128], strides = [1, 1]} : vector<8x512xf32> to vector<8x128xf32>
    %190 = math.tanh %189 : vector<8x128xf32>
    %191 = vector.extract_strided_slice %176 {offsets = [0, 384], sizes = [8, 128], strides = [1, 1]} : vector<8x512xf32> to vector<8x128xf32>
    %192 = arith.negf %191 : vector<8x128xf32>
    %193 = math.exp %192 : vector<8x128xf32>
    %cst_108 = arith.constant 1.000000e+00 : f32
    %194 = vector.broadcast %cst_108 : f32 to vector<8x128xf32>
    %195 = arith.addf %194, %193 : vector<8x128xf32>
    %196 = arith.divf %194, %195 : vector<8x128xf32>
    %197 = arith.mulf %188, %166 : vector<8x128xf32>
    %198 = arith.mulf %182, %190 : vector<8x128xf32>
    %199 = arith.addf %197, %198 : vector<8x128xf32>
    %200 = math.tanh %199 : vector<8x128xf32>
    %201 = arith.mulf %196, %200 : vector<8x128xf32>
    %c2_i32 = arith.constant 2 : i32
    %c8_i32_109 = arith.constant 8 : i32
    %202 = arith.muli %c2_i32, %c8_i32_109 : i32
    %203 = tpu.assume_multiple %202, 8 : i32
    %204 = arith.index_cast %203 : i32 to index
    %c0_110 = arith.constant 0 : index
    %205 = vector.load %arg8[%204, %c0_110] : memref<64x128xf32, #tpu.memory_space<vmem>>, vector<8x128xf32>
    %206 = tpu.concatenate %205, %201 in 1 : vector<8x128xf32>, vector<8x128xf32> -> vector<8x256xf32>
    %207 = arith.truncf %206 : vector<8x256xf32> to vector<8x256xbf16>
    %cst_111 = arith.constant dense<0.000000e+00> : vector<8x512xf32>
    %208 = tpu.matmul %207, %130, %cst_111 {dimension_numbers = #tpu.dot_dimension_numbers<[1], [0], [0], [1], [0, 0, 1, 1], [], []>} : vector<8x256xbf16>, vector<256x512xbf16>, vector<8x512xf32> -> vector<8x512xf32>
    %209 = arith.addf %208, %133 : vector<8x512xf32>
    %210 = vector.extract_strided_slice %209 {offsets = [0, 0], sizes = [8, 128], strides = [1, 1]} : vector<8x512xf32> to vector<8x128xf32>
    %211 = arith.negf %210 : vector<8x128xf32>
    %212 = math.exp %211 : vector<8x128xf32>
    %cst_112 = arith.constant 1.000000e+00 : f32
    %213 = vector.broadcast %cst_112 : f32 to vector<8x128xf32>
    %214 = arith.addf %213, %212 : vector<8x128xf32>
    %215 = arith.divf %213, %214 : vector<8x128xf32>
    %216 = vector.extract_strided_slice %209 {offsets = [0, 128], sizes = [8, 128], strides = [1, 1]} : vector<8x512xf32> to vector<8x128xf32>
    %217 = arith.negf %216 : vector<8x128xf32>
    %218 = math.exp %217 : vector<8x128xf32>
    %cst_113 = arith.constant 1.000000e+00 : f32
    %219 = vector.broadcast %cst_113 : f32 to vector<8x128xf32>
    %220 = arith.addf %219, %218 : vector<8x128xf32>
    %221 = arith.divf %219, %220 : vector<8x128xf32>
    %222 = vector.extract_strided_slice %209 {offsets = [0, 256], sizes = [8, 128], strides = [1, 1]} : vector<8x512xf32> to vector<8x128xf32>
    %223 = math.tanh %222 : vector<8x128xf32>
    %224 = vector.extract_strided_slice %209 {offsets = [0, 384], sizes = [8, 128], strides = [1, 1]} : vector<8x512xf32> to vector<8x128xf32>
    %225 = arith.negf %224 : vector<8x128xf32>
    %226 = math.exp %225 : vector<8x128xf32>
    %cst_114 = arith.constant 1.000000e+00 : f32
    %227 = vector.broadcast %cst_114 : f32 to vector<8x128xf32>
    %228 = arith.addf %227, %226 : vector<8x128xf32>
    %229 = arith.divf %227, %228 : vector<8x128xf32>
    %230 = arith.mulf %221, %199 : vector<8x128xf32>
    %231 = arith.mulf %215, %223 : vector<8x128xf32>
    %232 = arith.addf %230, %231 : vector<8x128xf32>
    %233 = math.tanh %232 : vector<8x128xf32>
    %234 = arith.mulf %229, %233 : vector<8x128xf32>
    %c3_i32 = arith.constant 3 : i32
    %c8_i32_115 = arith.constant 8 : i32
    %235 = arith.muli %c3_i32, %c8_i32_115 : i32
    %236 = tpu.assume_multiple %235, 8 : i32
    %237 = arith.index_cast %236 : i32 to index
    %c0_116 = arith.constant 0 : index
    %238 = vector.load %arg8[%237, %c0_116] : memref<64x128xf32, #tpu.memory_space<vmem>>, vector<8x128xf32>
    %239 = tpu.concatenate %238, %234 in 1 : vector<8x128xf32>, vector<8x128xf32> -> vector<8x256xf32>
    %240 = arith.truncf %239 : vector<8x256xf32> to vector<8x256xbf16>
    %cst_117 = arith.constant dense<0.000000e+00> : vector<8x512xf32>
    %241 = tpu.matmul %240, %130, %cst_117 {dimension_numbers = #tpu.dot_dimension_numbers<[1], [0], [0], [1], [0, 0, 1, 1], [], []>} : vector<8x256xbf16>, vector<256x512xbf16>, vector<8x512xf32> -> vector<8x512xf32>
    %242 = arith.addf %241, %133 : vector<8x512xf32>
    %243 = vector.extract_strided_slice %242 {offsets = [0, 0], sizes = [8, 128], strides = [1, 1]} : vector<8x512xf32> to vector<8x128xf32>
    %244 = arith.negf %243 : vector<8x128xf32>
    %245 = math.exp %244 : vector<8x128xf32>
    %cst_118 = arith.constant 1.000000e+00 : f32
    %246 = vector.broadcast %cst_118 : f32 to vector<8x128xf32>
    %247 = arith.addf %246, %245 : vector<8x128xf32>
    %248 = arith.divf %246, %247 : vector<8x128xf32>
    %249 = vector.extract_strided_slice %242 {offsets = [0, 128], sizes = [8, 128], strides = [1, 1]} : vector<8x512xf32> to vector<8x128xf32>
    %250 = arith.negf %249 : vector<8x128xf32>
    %251 = math.exp %250 : vector<8x128xf32>
    %cst_119 = arith.constant 1.000000e+00 : f32
    %252 = vector.broadcast %cst_119 : f32 to vector<8x128xf32>
    %253 = arith.addf %252, %251 : vector<8x128xf32>
    %254 = arith.divf %252, %253 : vector<8x128xf32>
    %255 = vector.extract_strided_slice %242 {offsets = [0, 256], sizes = [8, 128], strides = [1, 1]} : vector<8x512xf32> to vector<8x128xf32>
    %256 = math.tanh %255 : vector<8x128xf32>
    %257 = vector.extract_strided_slice %242 {offsets = [0, 384], sizes = [8, 128], strides = [1, 1]} : vector<8x512xf32> to vector<8x128xf32>
    %258 = arith.negf %257 : vector<8x128xf32>
    %259 = math.exp %258 : vector<8x128xf32>
    %cst_120 = arith.constant 1.000000e+00 : f32
    %260 = vector.broadcast %cst_120 : f32 to vector<8x128xf32>
    %261 = arith.addf %260, %259 : vector<8x128xf32>
    %262 = arith.divf %260, %261 : vector<8x128xf32>
    %263 = arith.mulf %254, %232 : vector<8x128xf32>
    %264 = arith.mulf %248, %256 : vector<8x128xf32>
    %265 = arith.addf %263, %264 : vector<8x128xf32>
    %266 = math.tanh %265 : vector<8x128xf32>
    %267 = arith.mulf %262, %266 : vector<8x128xf32>
    %c4_i32 = arith.constant 4 : i32
    %c8_i32_121 = arith.constant 8 : i32
    %268 = arith.muli %c4_i32, %c8_i32_121 : i32
    %269 = tpu.assume_multiple %268, 8 : i32
    %270 = arith.index_cast %269 : i32 to index
    %c0_122 = arith.constant 0 : index
    %271 = vector.load %arg8[%270, %c0_122] : memref<64x128xf32, #tpu.memory_space<vmem>>, vector<8x128xf32>
    %272 = tpu.concatenate %271, %267 in 1 : vector<8x128xf32>, vector<8x128xf32> -> vector<8x256xf32>
    %273 = arith.truncf %272 : vector<8x256xf32> to vector<8x256xbf16>
    %cst_123 = arith.constant dense<0.000000e+00> : vector<8x512xf32>
    %274 = tpu.matmul %273, %130, %cst_123 {dimension_numbers = #tpu.dot_dimension_numbers<[1], [0], [0], [1], [0, 0, 1, 1], [], []>} : vector<8x256xbf16>, vector<256x512xbf16>, vector<8x512xf32> -> vector<8x512xf32>
    %275 = arith.addf %274, %133 : vector<8x512xf32>
    %276 = vector.extract_strided_slice %275 {offsets = [0, 0], sizes = [8, 128], strides = [1, 1]} : vector<8x512xf32> to vector<8x128xf32>
    %277 = arith.negf %276 : vector<8x128xf32>
    %278 = math.exp %277 : vector<8x128xf32>
    %cst_124 = arith.constant 1.000000e+00 : f32
    %279 = vector.broadcast %cst_124 : f32 to vector<8x128xf32>
    %280 = arith.addf %279, %278 : vector<8x128xf32>
    %281 = arith.divf %279, %280 : vector<8x128xf32>
    %282 = vector.extract_strided_slice %275 {offsets = [0, 128], sizes = [8, 128], strides = [1, 1]} : vector<8x512xf32> to vector<8x128xf32>
    %283 = arith.negf %282 : vector<8x128xf32>
    %284 = math.exp %283 : vector<8x128xf32>
    %cst_125 = arith.constant 1.000000e+00 : f32
    %285 = vector.broadcast %cst_125 : f32 to vector<8x128xf32>
    %286 = arith.addf %285, %284 : vector<8x128xf32>
    %287 = arith.divf %285, %286 : vector<8x128xf32>
    %288 = vector.extract_strided_slice %275 {offsets = [0, 256], sizes = [8, 128], strides = [1, 1]} : vector<8x512xf32> to vector<8x128xf32>
    %289 = math.tanh %288 : vector<8x128xf32>
    %290 = vector.extract_strided_slice %275 {offsets = [0, 384], sizes = [8, 128], strides = [1, 1]} : vector<8x512xf32> to vector<8x128xf32>
    %291 = arith.negf %290 : vector<8x128xf32>
    %292 = math.exp %291 : vector<8x128xf32>
    %cst_126 = arith.constant 1.000000e+00 : f32
    %293 = vector.broadcast %cst_126 : f32 to vector<8x128xf32>
    %294 = arith.addf %293, %292 : vector<8x128xf32>
    %295 = arith.divf %293, %294 : vector<8x128xf32>
    %296 = arith.mulf %287, %265 : vector<8x128xf32>
    %297 = arith.mulf %281, %289 : vector<8x128xf32>
    %298 = arith.addf %296, %297 : vector<8x128xf32>
    %299 = math.tanh %298 : vector<8x128xf32>
    %300 = arith.mulf %295, %299 : vector<8x128xf32>
    %c5_i32 = arith.constant 5 : i32
    %c8_i32_127 = arith.constant 8 : i32
    %301 = arith.muli %c5_i32, %c8_i32_127 : i32
    %302 = tpu.assume_multiple %301, 8 : i32
    %303 = arith.index_cast %302 : i32 to index
    %c0_128 = arith.constant 0 : index
    %304 = vector.load %arg8[%303, %c0_128] : memref<64x128xf32, #tpu.memory_space<vmem>>, vector<8x128xf32>
    %305 = tpu.concatenate %304, %300 in 1 : vector<8x128xf32>, vector<8x128xf32> -> vector<8x256xf32>
    %306 = arith.truncf %305 : vector<8x256xf32> to vector<8x256xbf16>
    %cst_129 = arith.constant dense<0.000000e+00> : vector<8x512xf32>
    %307 = tpu.matmul %306, %130, %cst_129 {dimension_numbers = #tpu.dot_dimension_numbers<[1], [0], [0], [1], [0, 0, 1, 1], [], []>} : vector<8x256xbf16>, vector<256x512xbf16>, vector<8x512xf32> -> vector<8x512xf32>
    %308 = arith.addf %307, %133 : vector<8x512xf32>
    %309 = vector.extract_strided_slice %308 {offsets = [0, 0], sizes = [8, 128], strides = [1, 1]} : vector<8x512xf32> to vector<8x128xf32>
    %310 = arith.negf %309 : vector<8x128xf32>
    %311 = math.exp %310 : vector<8x128xf32>
    %cst_130 = arith.constant 1.000000e+00 : f32
    %312 = vector.broadcast %cst_130 : f32 to vector<8x128xf32>
    %313 = arith.addf %312, %311 : vector<8x128xf32>
    %314 = arith.divf %312, %313 : vector<8x128xf32>
    %315 = vector.extract_strided_slice %308 {offsets = [0, 128], sizes = [8, 128], strides = [1, 1]} : vector<8x512xf32> to vector<8x128xf32>
    %316 = arith.negf %315 : vector<8x128xf32>
    %317 = math.exp %316 : vector<8x128xf32>
    %cst_131 = arith.constant 1.000000e+00 : f32
    %318 = vector.broadcast %cst_131 : f32 to vector<8x128xf32>
    %319 = arith.addf %318, %317 : vector<8x128xf32>
    %320 = arith.divf %318, %319 : vector<8x128xf32>
    %321 = vector.extract_strided_slice %308 {offsets = [0, 256], sizes = [8, 128], strides = [1, 1]} : vector<8x512xf32> to vector<8x128xf32>
    %322 = math.tanh %321 : vector<8x128xf32>
    %323 = vector.extract_strided_slice %308 {offsets = [0, 384], sizes = [8, 128], strides = [1, 1]} : vector<8x512xf32> to vector<8x128xf32>
    %324 = arith.negf %323 : vector<8x128xf32>
    %325 = math.exp %324 : vector<8x128xf32>
    %cst_132 = arith.constant 1.000000e+00 : f32
    %326 = vector.broadcast %cst_132 : f32 to vector<8x128xf32>
    %327 = arith.addf %326, %325 : vector<8x128xf32>
    %328 = arith.divf %326, %327 : vector<8x128xf32>
    %329 = arith.mulf %320, %298 : vector<8x128xf32>
    %330 = arith.mulf %314, %322 : vector<8x128xf32>
    %331 = arith.addf %329, %330 : vector<8x128xf32>
    %332 = math.tanh %331 : vector<8x128xf32>
    %333 = arith.mulf %328, %332 : vector<8x128xf32>
    %c6_i32 = arith.constant 6 : i32
    %c8_i32_133 = arith.constant 8 : i32
    %334 = arith.muli %c6_i32, %c8_i32_133 : i32
    %335 = tpu.assume_multiple %334, 8 : i32
    %336 = arith.index_cast %335 : i32 to index
    %c0_134 = arith.constant 0 : index
    %337 = vector.load %arg8[%336, %c0_134] : memref<64x128xf32, #tpu.memory_space<vmem>>, vector<8x128xf32>
    %338 = tpu.concatenate %337, %333 in 1 : vector<8x128xf32>, vector<8x128xf32> -> vector<8x256xf32>
    %339 = arith.truncf %338 : vector<8x256xf32> to vector<8x256xbf16>
    %cst_135 = arith.constant dense<0.000000e+00> : vector<8x512xf32>
    %340 = tpu.matmul %339, %130, %cst_135 {dimension_numbers = #tpu.dot_dimension_numbers<[1], [0], [0], [1], [0, 0, 1, 1], [], []>} : vector<8x256xbf16>, vector<256x512xbf16>, vector<8x512xf32> -> vector<8x512xf32>
    %341 = arith.addf %340, %133 : vector<8x512xf32>
    %342 = vector.extract_strided_slice %341 {offsets = [0, 0], sizes = [8, 128], strides = [1, 1]} : vector<8x512xf32> to vector<8x128xf32>
    %343 = arith.negf %342 : vector<8x128xf32>
    %344 = math.exp %343 : vector<8x128xf32>
    %cst_136 = arith.constant 1.000000e+00 : f32
    %345 = vector.broadcast %cst_136 : f32 to vector<8x128xf32>
    %346 = arith.addf %345, %344 : vector<8x128xf32>
    %347 = arith.divf %345, %346 : vector<8x128xf32>
    %348 = vector.extract_strided_slice %341 {offsets = [0, 128], sizes = [8, 128], strides = [1, 1]} : vector<8x512xf32> to vector<8x128xf32>
    %349 = arith.negf %348 : vector<8x128xf32>
    %350 = math.exp %349 : vector<8x128xf32>
    %cst_137 = arith.constant 1.000000e+00 : f32
    %351 = vector.broadcast %cst_137 : f32 to vector<8x128xf32>
    %352 = arith.addf %351, %350 : vector<8x128xf32>
    %353 = arith.divf %351, %352 : vector<8x128xf32>
    %354 = vector.extract_strided_slice %341 {offsets = [0, 256], sizes = [8, 128], strides = [1, 1]} : vector<8x512xf32> to vector<8x128xf32>
    %355 = math.tanh %354 : vector<8x128xf32>
    %356 = vector.extract_strided_slice %341 {offsets = [0, 384], sizes = [8, 128], strides = [1, 1]} : vector<8x512xf32> to vector<8x128xf32>
    %357 = arith.negf %356 : vector<8x128xf32>
    %358 = math.exp %357 : vector<8x128xf32>
    %cst_138 = arith.constant 1.000000e+00 : f32
    %359 = vector.broadcast %cst_138 : f32 to vector<8x128xf32>
    %360 = arith.addf %359, %358 : vector<8x128xf32>
    %361 = arith.divf %359, %360 : vector<8x128xf32>
    %362 = arith.mulf %353, %331 : vector<8x128xf32>
    %363 = arith.mulf %347, %355 : vector<8x128xf32>
    %364 = arith.addf %362, %363 : vector<8x128xf32>
    %365 = math.tanh %364 : vector<8x128xf32>
    %366 = arith.mulf %361, %365 : vector<8x128xf32>
    %c7_i32 = arith.constant 7 : i32
    %c8_i32_139 = arith.constant 8 : i32
    %367 = arith.muli %c7_i32, %c8_i32_139 : i32
    %368 = tpu.assume_multiple %367, 8 : i32
    %369 = arith.index_cast %368 : i32 to index
    %c0_140 = arith.constant 0 : index
    %370 = vector.load %arg8[%369, %c0_140] : memref<64x128xf32, #tpu.memory_space<vmem>>, vector<8x128xf32>
    %371 = tpu.concatenate %370, %366 in 1 : vector<8x128xf32>, vector<8x128xf32> -> vector<8x256xf32>
    %372 = arith.truncf %371 : vector<8x256xf32> to vector<8x256xbf16>
    %cst_141 = arith.constant dense<0.000000e+00> : vector<8x512xf32>
    %373 = tpu.matmul %372, %130, %cst_141 {dimension_numbers = #tpu.dot_dimension_numbers<[1], [0], [0], [1], [0, 0, 1, 1], [], []>} : vector<8x256xbf16>, vector<256x512xbf16>, vector<8x512xf32> -> vector<8x512xf32>
    %374 = arith.addf %373, %133 : vector<8x512xf32>
    %375 = vector.extract_strided_slice %374 {offsets = [0, 0], sizes = [8, 128], strides = [1, 1]} : vector<8x512xf32> to vector<8x128xf32>
    %376 = arith.negf %375 : vector<8x128xf32>
    %377 = math.exp %376 : vector<8x128xf32>
    %cst_142 = arith.constant 1.000000e+00 : f32
    %378 = vector.broadcast %cst_142 : f32 to vector<8x128xf32>
    %379 = arith.addf %378, %377 : vector<8x128xf32>
    %380 = arith.divf %378, %379 : vector<8x128xf32>
    %381 = vector.extract_strided_slice %374 {offsets = [0, 128], sizes = [8, 128], strides = [1, 1]} : vector<8x512xf32> to vector<8x128xf32>
    %382 = arith.negf %381 : vector<8x128xf32>
    %383 = math.exp %382 : vector<8x128xf32>
    %cst_143 = arith.constant 1.000000e+00 : f32
    %384 = vector.broadcast %cst_143 : f32 to vector<8x128xf32>
    %385 = arith.addf %384, %383 : vector<8x128xf32>
    %386 = arith.divf %384, %385 : vector<8x128xf32>
    %387 = vector.extract_strided_slice %374 {offsets = [0, 256], sizes = [8, 128], strides = [1, 1]} : vector<8x512xf32> to vector<8x128xf32>
    %388 = math.tanh %387 : vector<8x128xf32>
    %389 = vector.extract_strided_slice %374 {offsets = [0, 384], sizes = [8, 128], strides = [1, 1]} : vector<8x512xf32> to vector<8x128xf32>
    %390 = arith.negf %389 : vector<8x128xf32>
    %391 = math.exp %390 : vector<8x128xf32>
    %cst_144 = arith.constant 1.000000e+00 : f32
    %392 = vector.broadcast %cst_144 : f32 to vector<8x128xf32>
    %393 = arith.addf %392, %391 : vector<8x128xf32>
    %394 = arith.divf %392, %393 : vector<8x128xf32>
    %395 = arith.mulf %386, %364 : vector<8x128xf32>
    %396 = arith.mulf %380, %388 : vector<8x128xf32>
    %397 = arith.addf %395, %396 : vector<8x128xf32>
    %398 = math.tanh %397 : vector<8x128xf32>
    %399 = arith.mulf %394, %398 : vector<8x128xf32>
    %c8_i32_145 = arith.constant 8 : i32
    %400 = arith.truncf %399 : vector<8x128xf32> to vector<8x128xbf16>
    %c0_146 = arith.constant 0 : index
    %c0_147 = arith.constant 0 : index
    %401 = vector.load %arg5[%c0_146, %c0_147] : memref<128x128xbf16, #tpu.memory_space<vmem>>, vector<128x128xbf16>
    %cst_148 = arith.constant dense<0.000000e+00> : vector<8x128xf32>
    %402 = tpu.matmul %400, %401, %cst_148 {dimension_numbers = #tpu.dot_dimension_numbers<[1], [0], [0], [1], [0, 0, 1, 1], [], []>} : vector<8x128xbf16>, vector<128x128xbf16>, vector<8x128xf32> -> vector<8x128xf32>
    %c0_149 = arith.constant 0 : index
    %c0_150 = arith.constant 0 : index
    %403 = vector.load %arg6[%c0_149, %c0_150] : memref<1x128xf32, #tpu.memory_space<vmem>>, vector<1x128xf32>
    %404 = vector.broadcast %403 : vector<1x128xf32> to vector<8x128xf32>
    %405 = arith.addf %402, %404 : vector<8x128xf32>
    %c0_151 = arith.constant 0 : index
    %c0_152 = arith.constant 0 : index
    %406 = vector.load %arg7[%c0_151, %c0_152] : memref<8x128xf32, #tpu.memory_space<vmem>>, vector<8x128xf32>
    tpu.vector_store %arg7[%c0_151, %c0_152], %405 {strides = array<i32>} : memref<8x128xf32, #tpu.memory_space<vmem>>, vector<8x128xf32>,
    return
  }
  func.func @transform_0(%arg0: i32, %arg1: memref<8x8xi32, #tpu.memory_space<smem>>) -> (i32, i32, i32) {
    %c0_i32 = arith.constant 0 : i32
    %c0_i32_0 = arith.constant 0 : i32
    %c0_i32_1 = arith.constant 0 : i32
    %c0_i32_2 = arith.constant 0 : i32
    return %c0_i32, %c0_i32_0, %c0_i32_1 : i32, i32, i32
  }
  func.func @transform_1(%arg0: i32, %arg1: memref<8x8xi32, #tpu.memory_space<smem>>) -> (i32, i32) {
    %c0_i32 = arith.constant 0 : i32
    %c0_i32_0 = arith.constant 0 : i32
    %c0_i32_1 = arith.constant 0 : i32
    return %c0_i32, %c0_i32_0 : i32, i32
  }
  func.func @transform_2(%arg0: i32, %arg1: memref<8x8xi32, #tpu.memory_space<smem>>) -> (i32, i32) {
    %c0_i32 = arith.constant 0 : i32
    %c0_i32_0 = arith.constant 0 : i32
    %c0_i32_1 = arith.constant 0 : i32
    return %c0_i32, %c0_i32_0 : i32, i32
  }
  func.func @transform_3(%arg0: i32, %arg1: memref<8x8xi32, #tpu.memory_space<smem>>) -> (i32, i32) {
    %c0_i32 = arith.constant 0 : i32
    %c0_i32_0 = arith.constant 0 : i32
    %c0_i32_1 = arith.constant 0 : i32
    return %c0_i32, %c0_i32_0 : i32, i32
  }
  func.func @transform_4(%arg0: i32, %arg1: memref<8x8xi32, #tpu.memory_space<smem>>) -> (i32, i32) {
    %c0_i32 = arith.constant 0 : i32
    %c0_i32_0 = arith.constant 0 : i32
    %c0_i32_1 = arith.constant 0 : i32
    return %c0_i32, %c0_i32_0 : i32, i32
  }
  func.func @transform_5(%arg0: i32, %arg1: memref<8x8xi32, #tpu.memory_space<smem>>) -> (i32, i32) {
    %c0_i32 = arith.constant 0 : i32
    %c0_i32_0 = arith.constant 0 : i32
    return %arg0, %c0_i32 : i32, i32
  }
}

</mosaic_0001>

<llo_original>
// kernel: tpu_custom_call.1
$region0: #{tpu_custom_call.1}
  #allocation0 [shape = 'u32[]', space=smem, size = 0x4, offset = 0x4, fixed_abs, tag = 'smem constant byte address 0x4 - core index']
  #allocation1 [shape = 'u32[144,128]{1,0:T(1,128)}', space=vmem, size = 0x12000, scoped, tag = 'internal scratch']
  #allocation2 [shape = 'f32[64,128]{1,0:T(8,128)}', space=vmem, size = 0x8000, scoped, tag = 'scratch operand']
  #allocation3 [shape = 's32[1]{0}', space=sflag, size = 0x4, scoped, tag = 'scoped memory for tpu_custom_call.1']
  #allocation4 [shape = 'u8[4096]{0}', space=smem, size = 0x1000, scoped, tag = 'prefetched SMEM operand 0']
  %s0 = inlined_call_operand.hbm [shape: s32[8,8], index: 0, kind: input, shape index: {}]
  %s1 = inlined_call_operand.hbm [shape: f32[56,1,128], index: 1, kind: input, shape index: {}]
  %s2 = inlined_call_operand.hbm [shape: bf16[256,512], index: 2, kind: input, shape index: {}]
  %s3 = inlined_call_operand.vmem [shape: f32[1,512], index: 3, kind: input, shape index: {}]
  %s4 = inlined_call_operand.hbm [shape: bf16[128,128], index: 4, kind: input, shape index: {}]
  %s5 = inlined_call_operand.vmem [shape: f32[1,128], index: 5, kind: input, shape index: {}]
  %s6 = inlined_call_operand.hbm [shape: f32[8,128], index: 6, kind: output, shape index: {}]
  %s7 = sld [smem:[#allocation0]]
  $region42: #{tpu_custom_call.1} parent=0
    _
  %s9 = ssub.s32 1, %s7
  %s10 = scalar_select 0, %s9, %s7
  %12 = dma.hbm_to_smem %s0, 128, [#allocation4], [#allocation3]
  %13 = dma.done [#allocation3], 128
  %14 = sfence
  $region1: #{tpu_custom_call.1} parent=0
    #allocation5 [shape = 'u8[28672]{0}', space=vmem, size = 0x7000, scoped, tag = 'input window, operand 1, single buffered']
    #allocation6 [shape = 's32[1]{0}', space=sflag, size = 0x4, scoped, tag = 'scoped memory for tpu_custom_call.1']
    #allocation7 [shape = 's32[1]{0}', space=sflag, size = 0x4, scoped, tag = 'scoped memory for tpu_custom_call.1']
    #allocation8 [shape = 'u8[262144]{0}', space=vmem, size = 0x40000, scoped, tag = 'input window, operand 2, single buffered']
    #allocation9 [shape = 's32[1]{0}', space=sflag, size = 0x4, scoped, tag = 'scoped memory for tpu_custom_call.1']
    #allocation10 [shape = 'u8[32768]{0}', space=vmem, size = 0x8000, scoped, tag = 'input window, operand 4, single buffered']
    #allocation11 [shape = 'u8[4096]{0}', space=vmem, size = 0x1000, scoped, tag = 'output window, operand 0, single buffered']
    %15 = vsyncpa [#allocation6], 0
    %16 = vsyncpa [#allocation9], 0
    %17 = vsyncpa [#allocation7], 0
    // Predicated region
    $region2: #{tpu_custom_call.1} parent=1 // pred_check
      _
    $region3: #{tpu_custom_call.1} parent=1 // pred_check_branch
      %19 = sbr.rel (0) target = $region5
    $region4: #{tpu_custom_call.1} parent=1 // pred_region
      %s21 = ssub.s32 896, 896
      %22 = vsyncadd [#allocation6], %s21
      %s23 = sshll.u32 [#allocation5], 4
      %s24 = int_to_ptr.vmem [resolvable:$true] %s23
      %29 = dma.hbm_to_vmem [thread:$0]  %s1, 896, %s24, [#allocation6], 16, 16, 1
    $region5: #{tpu_custom_call.1} parent=1 // pred_fallthru
      _
    // Predicated region
    $region6: #{tpu_custom_call.1} parent=1 // pred_check
      _
    $region7: #{tpu_custom_call.1} parent=1 // pred_check_branch
      %31 = sbr.rel (0) target = $region9
    $region8: #{tpu_custom_call.1} parent=1 // pred_region
      %s33 = ssub.s32 8192, 8192
      %34 = vsyncadd [#allocation9], %s33
      %s35 = sshll.u32 [#allocation8], 4
      %s36 = int_to_ptr.vmem [resolvable:$true] %s35
      %41 = dma.hbm_to_vmem [thread:$0]  %s2, 8192, %s36, [#allocation9], 256, 256, 16
    $region9: #{tpu_custom_call.1} parent=1 // pred_fallthru
      _
    // Predicated region
    $region10: #{tpu_custom_call.1} parent=1 // pred_check
      _
    $region11: #{tpu_custom_call.1} parent=1 // pred_check_branch
      %43 = sbr.rel (0) target = $region13
    $region12: #{tpu_custom_call.1} parent=1 // pred_region
      _
    $region13: #{tpu_custom_call.1} parent=1 // pred_fallthru
      _
    // Predicated region
    $region14: #{tpu_custom_call.1} parent=1 // pred_check
      _
    $region15: #{tpu_custom_call.1} parent=1 // pred_check_branch
      %45 = sbr.rel (0) target = $region17
    $region16: #{tpu_custom_call.1} parent=1 // pred_region
      %s47 = ssub.s32 1024, 1024
      %48 = vsyncadd [#allocation9], %s47
      %s49 = sshll.u32 [#allocation10], 4
      %s50 = int_to_ptr.vmem [resolvable:$true] %s49
      %55 = dma.hbm_to_vmem [thread:$0]  %s4, 1024, %s50, [#allocation9], 64, 64, 4
    $region17: #{tpu_custom_call.1} parent=1 // pred_fallthru
      _
    // Predicated region
    $region18: #{tpu_custom_call.1} parent=1 // pred_check
      _
    $region19: #{tpu_custom_call.1} parent=1 // pred_check_branch
      %57 = sbr.rel (0) target = $region21
    $region20: #{tpu_custom_call.1} parent=1 // pred_region
      _
    $region21: #{tpu_custom_call.1} parent=1 // pred_fallthru
      _
    // Predicated region
    $region22: #{tpu_custom_call.1} parent=1 // pred_check
      _
    $region23: #{tpu_custom_call.1} parent=1 // pred_check_branch
      %59 = sbr.rel (0) target = $region25
    $region24: #{tpu_custom_call.1} parent=1 // pred_region
      %60 = dma.done [#allocation6], 896
    $region25: #{tpu_custom_call.1} parent=1 // pred_fallthru
      _
    // Predicated region
    $region26: #{tpu_custom_call.1} parent=1 // pred_check
      _
    $region27: #{tpu_custom_call.1} parent=1 // pred_check_branch
      %62 = sbr.rel (0) target = $region29
    $region28: #{tpu_custom_call.1} parent=1 // pred_region
      %63 = dma.done [#allocation9], 8192
    $region29: #{tpu_custom_call.1} parent=1 // pred_fallthru
      _
    // Predicated region
    $region30: #{tpu_custom_call.1} parent=1 // pred_check
      _
    $region31: #{tpu_custom_call.1} parent=1 // pred_check_branch
      %65 = sbr.rel (0) target = $region33
    $region32: #{tpu_custom_call.1} parent=1 // pred_region
      %66 = dma.done [#allocation9], 1024
    $region33: #{tpu_custom_call.1} parent=1 // pred_fallthru
      _
    %68 = vst [vmem:[#allocation2] sm:$0xff] 0.0
    %69 = vst [vmem:[#allocation2 + $0x8] sm:$0xff] 0.0
    %70 = vst [vmem:[#allocation2 + $0x10] sm:$0xff] 0.0
    %71 = vst [vmem:[#allocation2 + $0x18] sm:$0xff] 0.0
    %72 = vst [vmem:[#allocation2 + $0x20] sm:$0xff] 0.0
    %73 = vst [vmem:[#allocation2 + $0x28] sm:$0xff] 0.0
    %74 = vst [vmem:[#allocation2 + $0x30] sm:$0xff] 0.0
    %75 = vst [vmem:[#allocation2 + $0x38] sm:$0xff] 0.0
    %s76 = smul.u32 0, 8
    %s77 = smul.u32 %s76, 128
    %s78 = sld [smem:[#allocation4 + %s77]]
    %s79 = scalar_lea.vmem [#allocation5], %s78
    %v80 = vld [vmem:[%s79] sm:$0x1]
    %81 = vst [vmem:[#allocation2] sm:$0x1] %v80
    %s82 = sadd.s32 %s76, 1
    %s83 = smul.u32 %s82, 128
    %s84 = sld [smem:[#allocation4 + %s83]]
    %s85 = scalar_lea.vmem [#allocation5], %s84
    %v86 = vld [vmem:[%s85] sm:$0x1]
    %87 = vst [vmem:[#allocation2 + $0x1] sm:$0x1] %v86
    %s88 = sadd.s32 %s77, 1
    %s89 = sld [smem:[#allocation4 + %s88]]
    %s90 = scalar_lea.vmem [#allocation5], %s89
    %v91 = vld [vmem:[%s90] sm:$0x1]
    %92 = vst [vmem:[#allocation2 + $0x8] sm:$0x1] %v91
    %s93 = sadd.s32 %s83, 1
    %s94 = sld [smem:[#allocation4 + %s93]]
    %s95 = scalar_lea.vmem [#allocation5], %s94
    %v96 = vld [vmem:[%s95] sm:$0x1]
    %97 = vst [vmem:[#allocation2 + $0x9] sm:$0x1] %v96
    %s98 = sadd.s32 %s77, 2
    %s99 = sld [smem:[#allocation4 + %s98]]
    %s100 = scalar_lea.vmem [#allocation5], %s99
    %v101 = vld [vmem:[%s100] sm:$0x1]
    %102 = vst [vmem:[#allocation2 + $0x10] sm:$0x1] %v101
    %s103 = sadd.s32 %s83, 2
    %s104 = sld [smem:[#allocation4 + %s103]]
    %s105 = scalar_lea.vmem [#allocation5], %s104
    %v106 = vld [vmem:[%s105] sm:$0x1]
    %107 = vst [vmem:[#allocation2 + $0x11] sm:$0x1] %v106
    %s108 = sadd.s32 %s77, 3
    %s109 = sld [smem:[#allocation4 + %s108]]
    %s110 = scalar_lea.vmem [#allocation5], %s109
    %v111 = vld [vmem:[%s110] sm:$0x1]
    %112 = vst [vmem:[#allocation2 + $0x18] sm:$0x1] %v111
    %s113 = sadd.s32 %s83, 3
    %s114 = sld [smem:[#allocation4 + %s113]]
    %s115 = scalar_lea.vmem [#allocation5], %s114
    %v116 = vld [vmem:[%s115] sm:$0x1]
    %117 = vst [vmem:[#allocation2 + $0x19] sm:$0x1] %v116
    %s118 = sadd.s32 %s77, 4
    %s119 = sld [smem:[#allocation4 + %s118]]
    %s120 = scalar_lea.vmem [#allocation5], %s119
    %v121 = vld [vmem:[%s120] sm:$0x1]
    %122 = vst [vmem:[#allocation2 + $0x20] sm:$0x1] %v121
    %s123 = sadd.s32 %s83, 4
    %s124 = sld [smem:[#allocation4 + %s123]]
    %s125 = scalar_lea.vmem [#allocation5], %s124
    %v126 = vld [vmem:[%s125] sm:$0x1]
    %127 = vst [vmem:[#allocation2 + $0x21] sm:$0x1] %v126
    %s128 = sadd.s32 %s77, 5
    %s129 = sld [smem:[#allocation4 + %s128]]
    %s130 = scalar_lea.vmem [#allocation5], %s129
    %v131 = vld [vmem:[%s130] sm:$0x1]
    %132 = vst [vmem:[#allocation2 + $0x28] sm:$0x1] %v131
    %s133 = sadd.s32 %s83, 5
    %s134 = sld [smem:[#allocation4 + %s133]]
    %s135 = scalar_lea.vmem [#allocation5], %s134
    %v136 = vld [vmem:[%s135] sm:$0x1]
    %137 = vst [vmem:[#allocation2 + $0x29] sm:$0x1] %v136
    %s138 = sadd.s32 %s77, 6
    %s139 = sld [smem:[#allocation4 + %s138]]
    %s140 = scalar_lea.vmem [#allocation5], %s139
    %v141 = vld [vmem:[%s140] sm:$0x1]
    %142 = vst [vmem:[#allocation2 + $0x30] sm:$0x1] %v141
    %s143 = sadd.s32 %s83, 6
    %s144 = sld [smem:[#allocation4 + %s143]]
    %s145 = scalar_lea.vmem [#allocation5], %s144
    %v146 = vld [vmem:[%s145] sm:$0x1]
    %147 = vst [vmem:[#allocation2 + $0x31] sm:$0x1] %v146
    %s148 = sadd.s32 %s77, 7
    %s149 = sld [smem:[#allocation4 + %s148]]
    %s150 = scalar_lea.vmem [#allocation5], %s149
    %v151 = vld [vmem:[%s150] sm:$0x1]
    %152 = vst [vmem:[#allocation2 + $0x38] sm:$0x1] %v151
    %s153 = sadd.s32 %s83, 7
    %s154 = sld [smem:[#allocation4 + %s153]]
    %s155 = scalar_lea.vmem [#allocation5], %s154
    %v156 = vld [vmem:[%s155] sm:$0x1]
    %157 = vst [vmem:[#allocation2 + $0x39] sm:$0x1] %v156
    %v158 = vld [vmem:[#allocation8] sm:$0xff]
    %v159 = vld [vmem:[#allocation8 + $0x8] sm:$0xff]
    %v160 = vld [vmem:[#allocation8 + $0x10] sm:$0xff]
    %v161 = vld [vmem:[#allocation8 + $0x18] sm:$0xff]
    %v162 = vld [vmem:[#allocation8 + $0x20] sm:$0xff]
    %v163 = vld [vmem:[#allocation8 + $0x28] sm:$0xff]
    %v164 = vld [vmem:[#allocation8 + $0x30] sm:$0xff]
    %v165 = vld [vmem:[#allocation8 + $0x38] sm:$0xff]
    %v166 = vld [vmem:[#allocation8 + $0x40] sm:$0xff]
    %v167 = vld [vmem:[#allocation8 + $0x48] sm:$0xff]
    %v168 = vld [vmem:[#allocation8 + $0x50] sm:$0xff]
    %v169 = vld [vmem:[#allocation8 + $0x58] sm:$0xff]
    %v170 = vld [vmem:[#allocation8 + $0x60] sm:$0xff]
    %v171 = vld [vmem:[#allocation8 + $0x68] sm:$0xff]
    %v172 = vld [vmem:[#allocation8 + $0x70] sm:$0xff]
    %v173 = vld [vmem:[#allocation8 + $0x78] sm:$0xff]
    %v174 = vld [vmem:[#allocation8 + $0x80] sm:$0xff]
    %v175 = vld [vmem:[#allocation8 + $0x88] sm:$0xff]
    %v176 = vld [vmem:[#allocation8 + $0x90] sm:$0xff]
    %v177 = vld [vmem:[#allocation8 + $0x98] sm:$0xff]
    %v178 = vld [vmem:[#allocation8 + $0xa0] sm:$0xff]
    %v179 = vld [vmem:[#allocation8 + $0xa8] sm:$0xff]
    %v180 = vld [vmem:[#allocation8 + $0xb0] sm:$0xff]
    %v181 = vld [vmem:[#allocation8 + $0xb8] sm:$0xff]
    %v182 = vld [vmem:[#allocation8 + $0xc0] sm:$0xff]
    %v183 = vld [vmem:[#allocation8 + $0xc8] sm:$0xff]
    %v184 = vld [vmem:[#allocation8 + $0xd0] sm:$0xff]
    %v185 = vld [vmem:[#allocation8 + $0xd8] sm:$0xff]
    %v186 = vld [vmem:[#allocation8 + $0xe0] sm:$0xff]
    %v187 = vld [vmem:[#allocation8 + $0xe8] sm:$0xff]
    %v188 = vld [vmem:[#allocation8 + $0xf0] sm:$0xff]
    %v189 = vld [vmem:[#allocation8 + $0xf8] sm:$0xff]
    %v190 = vld [vmem:[#allocation8 + $0x100] sm:$0xff]
    %v191 = vld [vmem:[#allocation8 + $0x108] sm:$0xff]
    %v192 = vld [vmem:[#allocation8 + $0x110] sm:$0xff]
    %v193 = vld [vmem:[#allocation8 + $0x118] sm:$0xff]
    %v194 = vld [vmem:[#allocation8 + $0x120] sm:$0xff]
    %v195 = vld [vmem:[#allocation8 + $0x128] sm:$0xff]
    %v196 = vld [vmem:[#allocation8 + $0x130] sm:$0xff]
    %v197 = vld [vmem:[#allocation8 + $0x138] sm:$0xff]
    %v198 = vld [vmem:[#allocation8 + $0x140] sm:$0xff]
    %v199 = vld [vmem:[#allocation8 + $0x148] sm:$0xff]
    %v200 = vld [vmem:[#allocation8 + $0x150] sm:$0xff]
    %v201 = vld [vmem:[#allocation8 + $0x158] sm:$0xff]
    %v202 = vld [vmem:[#allocation8 + $0x160] sm:$0xff]
    %v203 = vld [vmem:[#allocation8 + $0x168] sm:$0xff]
    %v204 = vld [vmem:[#allocation8 + $0x170] sm:$0xff]
    %v205 = vld [vmem:[#allocation8 + $0x178] sm:$0xff]
    %v206 = vld [vmem:[#allocation8 + $0x180] sm:$0xff]
    %v207 = vld [vmem:[#allocation8 + $0x188] sm:$0xff]
    %v208 = vld [vmem:[#allocation8 + $0x190] sm:$0xff]
    %v209 = vld [vmem:[#allocation8 + $0x198] sm:$0xff]
    %v210 = vld [vmem:[#allocation8 + $0x1a0] sm:$0xff]
    %v211 = vld [vmem:[#allocation8 + $0x1a8] sm:$0xff]
    %v212 = vld [vmem:[#allocation8 + $0x1b0] sm:$0xff]
    %v213 = vld [vmem:[#allocation8 + $0x1b8] sm:$0xff]
    %v214 = vld [vmem:[#allocation8 + $0x1c0] sm:$0xff]
    %v215 = vld [vmem:[#allocation8 + $0x1c8] sm:$0xff]
    %v216 = vld [vmem:[#allocation8 + $0x1d0] sm:$0xff]
    %v217 = vld [vmem:[#allocation8 + $0x1d8] sm:$0xff]
    %v218 = vld [vmem:[#allocation8 + $0x1e0] sm:$0xff]
    %v219 = vld [vmem:[#allocation8 + $0x1e8] sm:$0xff]
    %v220 = vld [vmem:[#allocation8 + $0x1f0] sm:$0xff]
    %v221 = vld [vmem:[#allocation8 + $0x1f8] sm:$0xff]
    %v222 = vld [vmem:[%s3] sm:$0xf]
    %v224 = vlaneseq
    %v225 = vshrl.u32 %v224, 7
    %v226 = vsub.s32 0, %v225
    %v227 = vrot.slane %v222, %v226
    %v228 = vlaneseq
    %v229 = vshrl.u32 %v228, 7
    %v230 = vsub.s32 1, %v229
    %v231 = vrot.slane %v222, %v230
    %v232 = vlaneseq
    %v233 = vshrl.u32 %v232, 7
    %v234 = vsub.s32 2, %v233
    %v235 = vrot.slane %v222, %v234
    %v236 = vlaneseq
    %v237 = vshrl.u32 %v236, 7
    %v238 = vsub.s32 3, %v237
    %v239 = vrot.slane %v222, %v238
    %v244 = vld [vmem:[#allocation2] sm:$0xff]
    %v245 = vpack.c.bf16 %v244, %v244
    %v246 = vpack.c.bf16 0.0, 0.0
    %v311 = vunpack.c.l.b16 %v158
    %v312 = vunpack.c.h.b16 %v158
    %v313 = vunpack.c.l.b16 %v159
    %v314 = vunpack.c.h.b16 %v159
    %v315 = vunpack.c.l.b16 %v160
    %v316 = vunpack.c.h.b16 %v160
    %v317 = vunpack.c.l.b16 %v161
    %v318 = vunpack.c.h.b16 %v161
    %v319 = vunpack.c.l.b16 %v162
    %v320 = vunpack.c.h.b16 %v162
    %v321 = vunpack.c.l.b16 %v163
    %v322 = vunpack.c.h.b16 %v163
    %v323 = vunpack.c.l.b16 %v164
    %v324 = vunpack.c.h.b16 %v164
    %v325 = vunpack.c.l.b16 %v165
    %v326 = vunpack.c.h.b16 %v165
    %v327 = vunpack.c.l.b16 %v166
    %v328 = vunpack.c.h.b16 %v166
    %v329 = vunpack.c.l.b16 %v167
    %v330 = vunpack.c.h.b16 %v167
    %v331 = vunpack.c.l.b16 %v168
    %v332 = vunpack.c.h.b16 %v168
    %v333 = vunpack.c.l.b16 %v169
    %v334 = vunpack.c.h.b16 %v169
    %v335 = vunpack.c.l.b16 %v170
    %v336 = vunpack.c.h.b16 %v170
    %v337 = vunpack.c.l.b16 %v171
    %v338 = vunpack.c.h.b16 %v171
    %v339 = vunpack.c.l.b16 %v172
    %v340 = vunpack.c.h.b16 %v172
    %v341 = vunpack.c.l.b16 %v173
    %v342 = vunpack.c.h.b16 %v173
    %v343 = vunpack.c.l.b16 %v174
    %v344 = vunpack.c.h.b16 %v174
    %v345 = vunpack.c.l.b16 %v175
    %v346 = vunpack.c.h.b16 %v175
    %v347 = vunpack.c.l.b16 %v176
    %v348 = vunpack.c.h.b16 %v176
    %v349 = vunpack.c.l.b16 %v177
    %v350 = vunpack.c.h.b16 %v177
    %v351 = vunpack.c.l.b16 %v178
    %v352 = vunpack.c.h.b16 %v178
    %v353 = vunpack.c.l.b16 %v179
    %v354 = vunpack.c.h.b16 %v179
    %v355 = vunpack.c.l.b16 %v180
    %v356 = vunpack.c.h.b16 %v180
    %v357 = vunpack.c.l.b16 %v181
    %v358 = vunpack.c.h.b16 %v181
    %v359 = vunpack.c.l.b16 %v182
    %v360 = vunpack.c.h.b16 %v182
    %v361 = vunpack.c.l.b16 %v183
    %v362 = vunpack.c.h.b16 %v183
    %v363 = vunpack.c.l.b16 %v184
    %v364 = vunpack.c.h.b16 %v184
    %v365 = vunpack.c.l.b16 %v185
    %v366 = vunpack.c.h.b16 %v185
    %v367 = vunpack.c.l.b16 %v186
    %v368 = vunpack.c.h.b16 %v186
    %v369 = vunpack.c.l.b16 %v187
    %v370 = vunpack.c.h.b16 %v187
    %v371 = vunpack.c.l.b16 %v188
    %v372 = vunpack.c.h.b16 %v188
    %v373 = vunpack.c.l.b16 %v189
    %v374 = vunpack.c.h.b16 %v189
    %v375 = vunpack.c.l.b16 %v190
    %v376 = vunpack.c.h.b16 %v190
    %v377 = vunpack.c.l.b16 %v191
    %v378 = vunpack.c.h.b16 %v191
    %v379 = vunpack.c.l.b16 %v192
    %v380 = vunpack.c.h.b16 %v192
    %v381 = vunpack.c.l.b16 %v193
    %v382 = vunpack.c.h.b16 %v193
    %v383 = vunpack.c.l.b16 %v194
    %v384 = vunpack.c.h.b16 %v194
    %v385 = vunpack.c.l.b16 %v195
    %v386 = vunpack.c.h.b16 %v195
    %v387 = vunpack.c.l.b16 %v196
    %v388 = vunpack.c.h.b16 %v196
    %v389 = vunpack.c.l.b16 %v197
    %v390 = vunpack.c.h.b16 %v197
    %v391 = vunpack.c.l.b16 %v198
    %v392 = vunpack.c.h.b16 %v198
    %v393 = vunpack.c.l.b16 %v199
    %v394 = vunpack.c.h.b16 %v199
    %v395 = vunpack.c.l.b16 %v200
    %v396 = vunpack.c.h.b16 %v200
    %v397 = vunpack.c.l.b16 %v201
    %v398 = vunpack.c.h.b16 %v201
    %v399 = vunpack.c.l.b16 %v202
    %v400 = vunpack.c.h.b16 %v202
    %v401 = vunpack.c.l.b16 %v203
    %v402 = vunpack.c.h.b16 %v203
    %v403 = vunpack.c.l.b16 %v204
    %v404 = vunpack.c.h.b16 %v204
    %v405 = vunpack.c.l.b16 %v205
    %v406 = vunpack.c.h.b16 %v205
    %v407 = vunpack.c.l.b16 %v206
    %v408 = vunpack.c.h.b16 %v206
    %v409 = vunpack.c.l.b16 %v207
    %v410 = vunpack.c.h.b16 %v207
    %v411 = vunpack.c.l.b16 %v208
    %v412 = vunpack.c.h.b16 %v208
    %v413 = vunpack.c.l.b16 %v209
    %v414 = vunpack.c.h.b16 %v209
    %v415 = vunpack.c.l.b16 %v210
    %v416 = vunpack.c.h.b16 %v210
    %v417 = vunpack.c.l.b16 %v211
    %v418 = vunpack.c.h.b16 %v211
    %v419 = vunpack.c.l.b16 %v212
    %v420 = vunpack.c.h.b16 %v212
    %v421 = vunpack.c.l.b16 %v213
    %v422 = vunpack.c.h.b16 %v213
    %v423 = vunpack.c.l.b16 %v214
    %v424 = vunpack.c.h.b16 %v214
    %v425 = vunpack.c.l.b16 %v215
    %v426 = vunpack.c.h.b16 %v215
    %v427 = vunpack.c.l.b16 %v216
    %v428 = vunpack.c.h.b16 %v216
    %v429 = vunpack.c.l.b16 %v217
    %v430 = vunpack.c.h.b16 %v217
    %v431 = vunpack.c.l.b16 %v218
    %v432 = vunpack.c.h.b16 %v218
    %v433 = vunpack.c.l.b16 %v219
    %v434 = vunpack.c.h.b16 %v219
    %v435 = vunpack.c.l.b16 %v220
    %v436 = vunpack.c.h.b16 %v220
    %v437 = vunpack.c.l.b16 %v221
    %v438 = vunpack.c.h.b16 %v221
    %v439 = vpack.c.b16 %v315, %v311
    %v440 = vpack.c.b16 %v316, %v312
    %v441 = vpack.c.b16 %v317, %v313
    %v442 = vpack.c.b16 %v318, %v314
    %v443 = vpack.c.b16 %v323, %v319
    %v444 = vpack.c.b16 %v324, %v320
    %v445 = vpack.c.b16 %v325, %v321
    %v446 = vpack.c.b16 %v326, %v322
    %v447 = vpack.c.b16 %v331, %v327
    %v448 = vpack.c.b16 %v332, %v328
    %v449 = vpack.c.b16 %v333, %v329
    %v450 = vpack.c.b16 %v334, %v330
    %v451 = vpack.c.b16 %v339, %v335
    %v452 = vpack.c.b16 %v340, %v336
    %v453 = vpack.c.b16 %v341, %v337
    %v454 = vpack.c.b16 %v342, %v338
    %v455 = vpack.c.b16 %v347, %v343
    %v456 = vpack.c.b16 %v348, %v344
    %v457 = vpack.c.b16 %v349, %v345
    %v458 = vpack.c.b16 %v350, %v346
    %v459 = vpack.c.b16 %v355, %v351
    %v460 = vpack.c.b16 %v356, %v352
    %v461 = vpack.c.b16 %v357, %v353
    %v462 = vpack.c.b16 %v358, %v354
    %v463 = vpack.c.b16 %v363, %v359
    %v464 = vpack.c.b16 %v364, %v360
    %v465 = vpack.c.b16 %v365, %v361
    %v466 = vpack.c.b16 %v366, %v362
    %v467 = vpack.c.b16 %v371, %v367
    %v468 = vpack.c.b16 %v372, %v368
    %v469 = vpack.c.b16 %v373, %v369
    %v470 = vpack.c.b16 %v374, %v370
    %v471 = vpack.c.b16 %v379, %v375
    %v472 = vpack.c.b16 %v380, %v376
    %v473 = vpack.c.b16 %v381, %v377
    %v474 = vpack.c.b16 %v382, %v378
    %v475 = vpack.c.b16 %v387, %v383
    %v476 = vpack.c.b16 %v388, %v384
    %v477 = vpack.c.b16 %v389, %v385
    %v478 = vpack.c.b16 %v390, %v386
    %v479 = vpack.c.b16 %v395, %v391
    %v480 = vpack.c.b16 %v396, %v392
    %v481 = vpack.c.b16 %v397, %v393
    %v482 = vpack.c.b16 %v398, %v394
    %v483 = vpack.c.b16 %v403, %v399
    %v484 = vpack.c.b16 %v404, %v400
    %v485 = vpack.c.b16 %v405, %v401
    %v486 = vpack.c.b16 %v406, %v402
    %v487 = vpack.c.b16 %v411, %v407
    %v488 = vpack.c.b16 %v412, %v408
    %v489 = vpack.c.b16 %v413, %v409
    %v490 = vpack.c.b16 %v414, %v410
    %v491 = vpack.c.b16 %v419, %v415
    %v492 = vpack.c.b16 %v420, %v416
    %v493 = vpack.c.b16 %v421, %v417
    %v494 = vpack.c.b16 %v422, %v418
    %v495 = vpack.c.b16 %v427, %v423
    %v496 = vpack.c.b16 %v428, %v424
    %v497 = vpack.c.b16 %v429, %v425
    %v498 = vpack.c.b16 %v430, %v426
    %v499 = vpack.c.b16 %v435, %v431
    %v500 = vpack.c.b16 %v436, %v432
    %v501 = vpack.c.b16 %v437, %v433
    %v502 = vpack.c.b16 %v438, %v434
    %567 = vmatprep.subr.bf16.mxu0 %v468
    %568 = vmatpush1.bf16.msra.mxu0 %v467
    %569 = vmatprep.subr.bf16.mxu0 %v464
    %570 = vmatpush1.bf16.msra.mxu0 %v463
    %571 = vmatprep.subr.bf16.mxu0 %v460
    %572 = vmatpush1.bf16.msra.mxu0 %v459
    %573 = vmatprep.subr.bf16.mxu0 %v456
    %574 = vmatpush1.bf16.msra.mxu0 %v455
    %575 = vmatprep.subr.bf16.mxu0 %v452
    %576 = vmatpush1.bf16.msra.mxu0 %v451
    %577 = vmatprep.subr.bf16.mxu0 %v448
    %578 = vmatpush1.bf16.msra.mxu0 %v447
    %579 = vmatprep.subr.bf16.mxu0 %v444
    %580 = vmatpush1.bf16.msra.mxu0 %v443
    %581 = vmatprep.subr.bf16.mxu0 %v440
    %582 = vmatpush1.bf16.msra.mxu0 %v439
    %583 = vmatprep.subr.bf16.mxu0 %v500
    %584 = vmatpush2.bf16.msra.mxu0 %v499
    %585 = vmatprep.subr.bf16.mxu0 %v496
    %586 = vmatpush2.bf16.msra.mxu0 %v495
    %587 = vmatprep.subr.bf16.mxu0 %v492
    %588 = vmatpush2.bf16.msra.mxu0 %v491
    %589 = vmatprep.subr.bf16.mxu0 %v488
    %590 = vmatpush2.bf16.msra.mxu0 %v487
    %591 = vmatprep.subr.bf16.mxu0 %v484
    %592 = vmatpush2.bf16.msra.mxu0 %v483
    %593 = vmatprep.subr.bf16.mxu0 %v480
    %594 = vmatpush2.bf16.msra.mxu0 %v479
    %595 = vmatprep.subr.bf16.mxu0 %v476
    %596 = vmatpush2.bf16.msra.mxu0 %v475
    %597 = vmatprep.subr.bf16.mxu0 %v472
    %598 = vmatpush2.bf16.msra.mxu0 %v471
    %599 = vmatprep.mubr.bf16.mxu0 %v246
    %600 = vmatmul.mubr.bf16.gmra.mxu0 %v245
    %v601 = vpop.f32.mrf.mxu0
    %v602 = vadd.f32 %v227, %v601
    %v603 = vpop.f32.mrf.mxu0
    %v604 = vadd.f32 %v231, %v603
    %v605 = vpop.f32.mrf.mxu0
    %v606 = vpop.f32.mrf.mxu0
    %607 = vdwg.mxu0
    %608 = vmatprep.subr.bf16.mxu0 %v470
    %609 = vmatpush1.bf16.msra.mxu0 %v469
    %610 = vmatprep.subr.bf16.mxu0 %v466
    %611 = vmatpush1.bf16.msra.mxu0 %v465
    %612 = vmatprep.subr.bf16.mxu0 %v462
    %613 = vmatpush1.bf16.msra.mxu0 %v461
    %614 = vmatprep.subr.bf16.mxu0 %v458
    %615 = vmatpush1.bf16.msra.mxu0 %v457
    %616 = vmatprep.subr.bf16.mxu0 %v454
    %617 = vmatpush1.bf16.msra.mxu0 %v453
    %618 = vmatprep.subr.bf16.mxu0 %v450
    %619 = vmatpush1.bf16.msra.mxu0 %v449
    %620 = vmatprep.subr.bf16.mxu0 %v446
    %621 = vmatpush1.bf16.msra.mxu0 %v445
    %622 = vmatprep.subr.bf16.mxu0 %v442
    %623 = vmatpush1.bf16.msra.mxu0 %v441
    %624 = vmatprep.subr.bf16.mxu0 %v502
    %625 = vmatpush2.bf16.msra.mxu0 %v501
    %626 = vmatprep.subr.bf16.mxu0 %v498
    %627 = vmatpush2.bf16.msra.mxu0 %v497
    %628 = vmatprep.subr.bf16.mxu0 %v494
    %629 = vmatpush2.bf16.msra.mxu0 %v493
    %630 = vmatprep.subr.bf16.mxu0 %v490
    %631 = vmatpush2.bf16.msra.mxu0 %v489
    %632 = vmatprep.subr.bf16.mxu0 %v486
    %633 = vmatpush2.bf16.msra.mxu0 %v485
    %634 = vmatprep.subr.bf16.mxu0 %v482
    %635 = vmatpush2.bf16.msra.mxu0 %v481
    %636 = vmatprep.subr.bf16.mxu0 %v478
    %637 = vmatpush2.bf16.msra.mxu0 %v477
    %638 = vmatprep.subr.bf16.mxu0 %v474
    %639 = vmatpush2.bf16.msra.mxu0 %v473
    %640 = vmatprep.mubr.bf16.mxu0 %v246
    %641 = vmatmul.mubr.bf16.gmra.mxu0 %v245
    %v642 = vpop.f32.mrf.mxu0
    %v643 = vadd.f32 %v235, %v642
    %v644 = vpop.f32.mrf.mxu0
    %v645 = vadd.f32 %v239, %v644
    %v646 = vpop.f32.mrf.mxu0
    %v647 = vpop.f32.mrf.mxu0
    %648 = vdwg.mxu0
    %v649 = vxor.u32 %v602, 2147483648
    %v650 = vmul.f32 %v649, 1.442695
    %v651 = vpow.pop %v650
    %v652 = vadd.f32 %v651, 1.0
    %v653 = vrcp.pop %v652
    %v654 = vmul.f32 1.0, %v653
    %v655 = vxor.u32 %v604, 2147483648
    %v656 = vmul.f32 %v655, 1.442695
    %v657 = vpow.pop %v656
    %v658 = vadd.f32 %v657, 1.0
    %v659 = vrcp.pop %v658
    %v660 = vmul.f32 1.0, %v659
    %v661 = vtanh.pop %v643
    %v662 = vxor.u32 %v645, 2147483648
    %v663 = vmul.f32 %v662, 1.442695
    %v664 = vpow.pop %v663
    %v665 = vadd.f32 %v664, 1.0
    %v666 = vrcp.pop %v665
    %v667 = vmul.f32 1.0, %v666
    %v668 = vmul.f32 %v660, 0.0
    %v669 = vmul.f32 %v654, %v661
    %v670 = vadd.f32 %v668, %v669
    %v671 = vtanh.pop %v670
    %v672 = vmul.f32 %v667, %v671
    %s673 = scalar_lea.vmem [#allocation2], 8
    %v674 = vld [vmem:[%s673] sm:$0xff]
    %v675 = vpack.c.bf16 %v674, %v674
    %v676 = vpack.c.bf16 %v672, %v672
    %677 = vmatprep.subr.bf16.mxu0 %v468
    %678 = vmatpush1.bf16.msra.mxu0 %v467
    %679 = vmatprep.subr.bf16.mxu0 %v464
    %680 = vmatpush1.bf16.msra.mxu0 %v463
    %681 = vmatprep.subr.bf16.mxu0 %v460
    %682 = vmatpush1.bf16.msra.mxu0 %v459
    %683 = vmatprep.subr.bf16.mxu0 %v456
    %684 = vmatpush1.bf16.msra.mxu0 %v455
    %685 = vmatprep.subr.bf16.mxu0 %v452
    %686 = vmatpush1.bf16.msra.mxu0 %v451
    %687 = vmatprep.subr.bf16.mxu0 %v448
    %688 = vmatpush1.bf16.msra.mxu0 %v447
    %689 = vmatprep.subr.bf16.mxu0 %v444
    %690 = vmatpush1.bf16.msra.mxu0 %v443
    %691 = vmatprep.subr.bf16.mxu0 %v440
    %692 = vmatpush1.bf16.msra.mxu0 %v439
    %693 = vmatprep.subr.bf16.mxu0 %v500
    %694 = vmatpush2.bf16.msra.mxu0 %v499
    %695 = vmatprep.subr.bf16.mxu0 %v496
    %696 = vmatpush2.bf16.msra.mxu0 %v495
    %697 = vmatprep.subr.bf16.mxu0 %v492
    %698 = vmatpush2.bf16.msra.mxu0 %v491
    %699 = vmatprep.subr.bf16.mxu0 %v488
    %700 = vmatpush2.bf16.msra.mxu0 %v487
    %701 = vmatprep.subr.bf16.mxu0 %v484
    %702 = vmatpush2.bf16.msra.mxu0 %v483
    %703 = vmatprep.subr.bf16.mxu0 %v480
    %704 = vmatpush2.bf16.msra.mxu0 %v479
    %705 = vmatprep.subr.bf16.mxu0 %v476
    %706 = vmatpush2.bf16.msra.mxu0 %v475
    %707 = vmatprep.subr.bf16.mxu0 %v472
    %708 = vmatpush2.bf16.msra.mxu0 %v471
    %709 = vmatprep.mubr.bf16.mxu0 %v676
    %710 = vmatmul.mubr.bf16.gmra.mxu0 %v675
    %v711 = vpop.f32.mrf.mxu0
    %v712 = vadd.f32 %v227, %v711
    %v713 = vpop.f32.mrf.mxu0
    %v714 = vadd.f32 %v231, %v713
    %v715 = vpop.f32.mrf.mxu0
    %v716 = vpop.f32.mrf.mxu0
    %717 = vdwg.mxu0
    %718 = vmatprep.subr.bf16.mxu0 %v470
    %719 = vmatpush1.bf16.msra.mxu0 %v469
    %720 = vmatprep.subr.bf16.mxu0 %v466
    %721 = vmatpush1.bf16.msra.mxu0 %v465
    %722 = vmatprep.subr.bf16.mxu0 %v462
    %723 = vmatpush1.bf16.msra.mxu0 %v461
    %724 = vmatprep.subr.bf16.mxu0 %v458
    %725 = vmatpush1.bf16.msra.mxu0 %v457
    %726 = vmatprep.subr.bf16.mxu0 %v454
    %727 = vmatpush1.bf16.msra.mxu0 %v453
    %728 = vmatprep.subr.bf16.mxu0 %v450
    %729 = vmatpush1.bf16.msra.mxu0 %v449
    %730 = vmatprep.subr.bf16.mxu0 %v446
    %731 = vmatpush1.bf16.msra.mxu0 %v445
    %732 = vmatprep.subr.bf16.mxu0 %v442
    %733 = vmatpush1.bf16.msra.mxu0 %v441
    %734 = vmatprep.subr.bf16.mxu0 %v502
    %735 = vmatpush2.bf16.msra.mxu0 %v501
    %736 = vmatprep.subr.bf16.mxu0 %v498
    %737 = vmatpush2.bf16.msra.mxu0 %v497
    %738 = vmatprep.subr.bf16.mxu0 %v494
    %739 = vmatpush2.bf16.msra.mxu0 %v493
    %740 = vmatprep.subr.bf16.mxu0 %v490
    %741 = vmatpush2.bf16.msra.mxu0 %v489
    %742 = vmatprep.subr.bf16.mxu0 %v486
    %743 = vmatpush2.bf16.msra.mxu0 %v485
    %744 = vmatprep.subr.bf16.mxu0 %v482
    %745 = vmatpush2.bf16.msra.mxu0 %v481
    %746 = vmatprep.subr.bf16.mxu0 %v478
    %747 = vmatpush2.bf16.msra.mxu0 %v477
    %748 = vmatprep.subr.bf16.mxu0 %v474
    %749 = vmatpush2.bf16.msra.mxu0 %v473
    %750 = vmatprep.mubr.bf16.mxu0 %v676
    %751 = vmatmul.mubr.bf16.gmra.mxu0 %v675
    %v752 = vpop.f32.mrf.mxu0
    %v753 = vadd.f32 %v235, %v752
    %v754 = vpop.f32.mrf.mxu0
    %v755 = vadd.f32 %v239, %v754
    %v756 = vpop.f32.mrf.mxu0
    %v757 = vpop.f32.mrf.mxu0
    %758 = vdwg.mxu0
    %v759 = vxor.u32 %v712, 2147483648
    %v760 = vmul.f32 %v759, 1.442695
    %v761 = vpow.pop %v760
    %v762 = vadd.f32 %v761, 1.0
    %v763 = vrcp.pop %v762
    %v764 = vmul.f32 1.0, %v763
    %v765 = vxor.u32 %v714, 2147483648
    %v766 = vmul.f32 %v765, 1.442695
    %v767 = vpow.pop %v766
    %v768 = vadd.f32 %v767, 1.0
    %v769 = vrcp.pop %v768
    %v770 = vmul.f32 1.0, %v769
    %v771 = vtanh.pop %v753
    %v772 = vxor.u32 %v755, 2147483648
    %v773 = vmul.f32 %v772, 1.442695
    %v774 = vpow.pop %v773
    %v775 = vadd.f32 %v774, 1.0
    %v776 = vrcp.pop %v775
    %v777 = vmul.f32 1.0, %v776
    %v778 = vmul.f32 %v770, %v670
    %v779 = vmul.f32 %v764, %v771
    %v780 = vadd.f32 %v778, %v779
    %v781 = vtanh.pop %v780
    %v782 = vmul.f32 %v777, %v781
    %s783 = scalar_lea.vmem [#allocation2], 16
    %v784 = vld [vmem:[%s783] sm:$0xff]
    %v785 = vpack.c.bf16 %v784, %v784
    %v786 = vpack.c.bf16 %v782, %v782
    %787 = vmatprep.subr.bf16.mxu0 %v468
    %788 = vmatpush1.bf16.msra.mxu0 %v467
    %789 = vmatprep.subr.bf16.mxu0 %v464
    %790 = vmatpush1.bf16.msra.mxu0 %v463
    %791 = vmatprep.subr.bf16.mxu0 %v460
    %792 = vmatpush1.bf16.msra.mxu0 %v459
    %793 = vmatprep.subr.bf16.mxu0 %v456
    %794 = vmatpush1.bf16.msra.mxu0 %v455
    %795 = vmatprep.subr.bf16.mxu0 %v452
    %796 = vmatpush1.bf16.msra.mxu0 %v451
    %797 = vmatprep.subr.bf16.mxu0 %v448
    %798 = vmatpush1.bf16.msra.mxu0 %v447
    %799 = vmatprep.subr.bf16.mxu0 %v444
    %800 = vmatpush1.bf16.msra.mxu0 %v443
    %801 = vmatprep.subr.bf16.mxu0 %v440
    %802 = vmatpush1.bf16.msra.mxu0 %v439
    %803 = vmatprep.subr.bf16.mxu0 %v500
    %804 = vmatpush2.bf16.msra.mxu0 %v499
    %805 = vmatprep.subr.bf16.mxu0 %v496
    %806 = vmatpush2.bf16.msra.mxu0 %v495
    %807 = vmatprep.subr.bf16.mxu0 %v492
    %808 = vmatpush2.bf16.msra.mxu0 %v491
    %809 = vmatprep.subr.bf16.mxu0 %v488
    %810 = vmatpush2.bf16.msra.mxu0 %v487
    %811 = vmatprep.subr.bf16.mxu0 %v484
    %812 = vmatpush2.bf16.msra.mxu0 %v483
    %813 = vmatprep.subr.bf16.mxu0 %v480
    %814 = vmatpush2.bf16.msra.mxu0 %v479
    %815 = vmatprep.subr.bf16.mxu0 %v476
    %816 = vmatpush2.bf16.msra.mxu0 %v475
    %817 = vmatprep.subr.bf16.mxu0 %v472
    %818 = vmatpush2.bf16.msra.mxu0 %v471
    %819 = vmatprep.mubr.bf16.mxu0 %v786
    %820 = vmatmul.mubr.bf16.gmra.mxu0 %v785
    %v821 = vpop.f32.mrf.mxu0
    %v822 = vadd.f32 %v227, %v821
    %v823 = vpop.f32.mrf.mxu0
    %v824 = vadd.f32 %v231, %v823
    %v825 = vpop.f32.mrf.mxu0
    %v826 = vpop.f32.mrf.mxu0
    %827 = vdwg.mxu0
    %828 = vmatprep.subr.bf16.mxu0 %v470
    %829 = vmatpush1.bf16.msra.mxu0 %v469
    %830 = vmatprep.subr.bf16.mxu0 %v466
    %831 = vmatpush1.bf16.msra.mxu0 %v465
    %832 = vmatprep.subr.bf16.mxu0 %v462
    %833 = vmatpush1.bf16.msra.mxu0 %v461
    %834 = vmatprep.subr.bf16.mxu0 %v458
    %835 = vmatpush1.bf16.msra.mxu0 %v457
    %836 = vmatprep.subr.bf16.mxu0 %v454
    %837 = vmatpush1.bf16.msra.mxu0 %v453
    %838 = vmatprep.subr.bf16.mxu0 %v450
    %839 = vmatpush1.bf16.msra.mxu0 %v449
    %840 = vmatprep.subr.bf16.mxu0 %v446
    %841 = vmatpush1.bf16.msra.mxu0 %v445
    %842 = vmatprep.subr.bf16.mxu0 %v442
    %843 = vmatpush1.bf16.msra.mxu0 %v441
    %844 = vmatprep.subr.bf16.mxu0 %v502
    %845 = vmatpush2.bf16.msra.mxu0 %v501
    %846 = vmatprep.subr.bf16.mxu0 %v498
    %847 = vmatpush2.bf16.msra.mxu0 %v497
    %848 = vmatprep.subr.bf16.mxu0 %v494
    %849 = vmatpush2.bf16.msra.mxu0 %v493
    %850 = vmatprep.subr.bf16.mxu0 %v490
    %851 = vmatpush2.bf16.msra.mxu0 %v489
    %852 = vmatprep.subr.bf16.mxu0 %v486
    %853 = vmatpush2.bf16.msra.mxu0 %v485
    %854 = vmatprep.subr.bf16.mxu0 %v482
    %855 = vmatpush2.bf16.msra.mxu0 %v481
    %856 = vmatprep.subr.bf16.mxu0 %v478
    %857 = vmatpush2.bf16.msra.mxu0 %v477
    %858 = vmatprep.subr.bf16.mxu0 %v474
    %859 = vmatpush2.bf16.msra.mxu0 %v473
    %860 = vmatprep.mubr.bf16.mxu0 %v786
    %861 = vmatmul.mubr.bf16.gmra.mxu0 %v785
    %v862 = vpop.f32.mrf.mxu0
    %v863 = vadd.f32 %v235, %v862
    %v864 = vpop.f32.mrf.mxu0
    %v865 = vadd.f32 %v239, %v864
    %v866 = vpop.f32.mrf.mxu0
    %v867 = vpop.f32.mrf.mxu0
    %868 = vdwg.mxu0
    %v869 = vxor.u32 %v822, 2147483648
    %v870 = vmul.f32 %v869, 1.442695
    %v871 = vpow.pop %v870
    %v872 = vadd.f32 %v871, 1.0
    %v873 = vrcp.pop %v872
    %v874 = vmul.f32 1.0, %v873
    %v875 = vxor.u32 %v824, 2147483648
    %v876 = vmul.f32 %v875, 1.442695
    %v877 = vpow.pop %v876
    %v878 = vadd.f32 %v877, 1.0
    %v879 = vrcp.pop %v878
    %v880 = vmul.f32 1.0, %v879
    %v881 = vtanh.pop %v863
    %v882 = vxor.u32 %v865, 2147483648
    %v883 = vmul.f32 %v882, 1.442695
    %v884 = vpow.pop %v883
    %v885 = vadd.f32 %v884, 1.0
    %v886 = vrcp.pop %v885
    %v887 = vmul.f32 1.0, %v886
    %v888 = vmul.f32 %v880, %v780
    %v889 = vmul.f32 %v874, %v881
    %v890 = vadd.f32 %v888, %v889
    %v891 = vtanh.pop %v890
    %v892 = vmul.f32 %v887, %v891
    %s893 = scalar_lea.vmem [#allocation2], 24
    %v894 = vld [vmem:[%s893] sm:$0xff]
    %v895 = vpack.c.bf16 %v894, %v894
    %v896 = vpack.c.bf16 %v892, %v892
    %897 = vmatprep.subr.bf16.mxu0 %v468
    %898 = vmatpush1.bf16.msra.mxu0 %v467
    %899 = vmatprep.subr.bf16.mxu0 %v464
    %900 = vmatpush1.bf16.msra.mxu0 %v463
    %901 = vmatprep.subr.bf16.mxu0 %v460
    %902 = vmatpush1.bf16.msra.mxu0 %v459
    %903 = vmatprep.subr.bf16.mxu0 %v456
    %904 = vmatpush1.bf16.msra.mxu0 %v455
    %905 = vmatprep.subr.bf16.mxu0 %v452
    %906 = vmatpush1.bf16.msra.mxu0 %v451
    %907 = vmatprep.subr.bf16.mxu0 %v448
    %908 = vmatpush1.bf16.msra.mxu0 %v447
    %909 = vmatprep.subr.bf16.mxu0 %v444
    %910 = vmatpush1.bf16.msra.mxu0 %v443
    %911 = vmatprep.subr.bf16.mxu0 %v440
    %912 = vmatpush1.bf16.msra.mxu0 %v439
    %913 = vmatprep.subr.bf16.mxu0 %v500
    %914 = vmatpush2.bf16.msra.mxu0 %v499
    %915 = vmatprep.subr.bf16.mxu0 %v496
    %916 = vmatpush2.bf16.msra.mxu0 %v495
    %917 = vmatprep.subr.bf16.mxu0 %v492
    %918 = vmatpush2.bf16.msra.mxu0 %v491
    %919 = vmatprep.subr.bf16.mxu0 %v488
    %920 = vmatpush2.bf16.msra.mxu0 %v487
    %921 = vmatprep.subr.bf16.mxu0 %v484
    %922 = vmatpush2.bf16.msra.mxu0 %v483
    %923 = vmatprep.subr.bf16.mxu0 %v480
    %924 = vmatpush2.bf16.msra.mxu0 %v479
    %925 = vmatprep.subr.bf16.mxu0 %v476
    %926 = vmatpush2.bf16.msra.mxu0 %v475
    %927 = vmatprep.subr.bf16.mxu0 %v472
    %928 = vmatpush2.bf16.msra.mxu0 %v471
    %929 = vmatprep.mubr.bf16.mxu0 %v896
    %930 = vmatmul.mubr.bf16.gmra.mxu0 %v895
    %v931 = vpop.f32.mrf.mxu0
    %v932 = vadd.f32 %v227, %v931
    %v933 = vpop.f32.mrf.mxu0
    %v934 = vadd.f32 %v231, %v933
    %v935 = vpop.f32.mrf.mxu0
    %v936 = vpop.f32.mrf.mxu0
    %937 = vdwg.mxu0
    %938 = vmatprep.subr.bf16.mxu0 %v470
    %939 = vmatpush1.bf16.msra.mxu0 %v469
    %940 = vmatprep.subr.bf16.mxu0 %v466
    %941 = vmatpush1.bf16.msra.mxu0 %v465
    %942 = vmatprep.subr.bf16.mxu0 %v462
    %943 = vmatpush1.bf16.msra.mxu0 %v461
    %944 = vmatprep.subr.bf16.mxu0 %v458
    %945 = vmatpush1.bf16.msra.mxu0 %v457
    %946 = vmatprep.subr.bf16.mxu0 %v454
    %947 = vmatpush1.bf16.msra.mxu0 %v453
    %948 = vmatprep.subr.bf16.mxu0 %v450
    %949 = vmatpush1.bf16.msra.mxu0 %v449
    %950 = vmatprep.subr.bf16.mxu0 %v446
    %951 = vmatpush1.bf16.msra.mxu0 %v445
    %952 = vmatprep.subr.bf16.mxu0 %v442
    %953 = vmatpush1.bf16.msra.mxu0 %v441
    %954 = vmatprep.subr.bf16.mxu0 %v502
    %955 = vmatpush2.bf16.msra.mxu0 %v501
    %956 = vmatprep.subr.bf16.mxu0 %v498
    %957 = vmatpush2.bf16.msra.mxu0 %v497
    %958 = vmatprep.subr.bf16.mxu0 %v494
    %959 = vmatpush2.bf16.msra.mxu0 %v493
    %960 = vmatprep.subr.bf16.mxu0 %v490
    %961 = vmatpush2.bf16.msra.mxu0 %v489
    %962 = vmatprep.subr.bf16.mxu0 %v486
    %963 = vmatpush2.bf16.msra.mxu0 %v485
    %964 = vmatprep.subr.bf16.mxu0 %v482
    %965 = vmatpush2.bf16.msra.mxu0 %v481
    %966 = vmatprep.subr.bf16.mxu0 %v478
    %967 = vmatpush2.bf16.msra.mxu0 %v477
    %968 = vmatprep.subr.bf16.mxu0 %v474
    %969 = vmatpush2.bf16.msra.mxu0 %v473
    %970 = vmatprep.mubr.bf16.mxu0 %v896
    %971 = vmatmul.mubr.bf16.gmra.mxu0 %v895
    %v972 = vpop.f32.mrf.mxu0
    %v973 = vadd.f32 %v235, %v972
    %v974 = vpop.f32.mrf.mxu0
    %v975 = vadd.f32 %v239, %v974
    %v976 = vpop.f32.mrf.mxu0
    %v977 = vpop.f32.mrf.mxu0
    %978 = vdwg.mxu0
    %v979 = vxor.u32 %v932, 2147483648
    %v980 = vmul.f32 %v979, 1.442695
    %v981 = vpow.pop %v980
    %v982 = vadd.f32 %v981, 1.0
    %v983 = vrcp.pop %v982
    %v984 = vmul.f32 1.0, %v983
    %v985 = vxor.u32 %v934, 2147483648
    %v986 = vmul.f32 %v985, 1.442695
    %v987 = vpow.pop %v986
    %v988 = vadd.f32 %v987, 1.0
    %v989 = vrcp.pop %v988
    %v990 = vmul.f32 1.0, %v989
    %v991 = vtanh.pop %v973
    %v992 = vxor.u32 %v975, 2147483648
    %v993 = vmul.f32 %v992, 1.442695
    %v994 = vpow.pop %v993
    %v995 = vadd.f32 %v994, 1.0
    %v996 = vrcp.pop %v995
    %v997 = vmul.f32 1.0, %v996
    %v998 = vmul.f32 %v990, %v890
    %v999 = vmul.f32 %v984, %v991
    %v1000 = vadd.f32 %v998, %v999
    %v1001 = vtanh.pop %v1000
    %v1002 = vmul.f32 %v997, %v1001
    %s1003 = scalar_lea.vmem [#allocation2], 32
    %v1004 = vld [vmem:[%s1003] sm:$0xff]
    %v1005 = vpack.c.bf16 %v1004, %v1004
    %v1006 = vpack.c.bf16 %v1002, %v1002
    %1007 = vmatprep.subr.bf16.mxu0 %v468
    %1008 = vmatpush1.bf16.msra.mxu0 %v467
    %1009 = vmatprep.subr.bf16.mxu0 %v464
    %1010 = vmatpush1.bf16.msra.mxu0 %v463
    %1011 = vmatprep.subr.bf16.mxu0 %v460
    %1012 = vmatpush1.bf16.msra.mxu0 %v459
    %1013 = vmatprep.subr.bf16.mxu0 %v456
    %1014 = vmatpush1.bf16.msra.mxu0 %v455
    %1015 = vmatprep.subr.bf16.mxu0 %v452
    %1016 = vmatpush1.bf16.msra.mxu0 %v451
    %1017 = vmatprep.subr.bf16.mxu0 %v448
    %1018 = vmatpush1.bf16.msra.mxu0 %v447
    %1019 = vmatprep.subr.bf16.mxu0 %v444
    %1020 = vmatpush1.bf16.msra.mxu0 %v443
    %1021 = vmatprep.subr.bf16.mxu0 %v440
    %1022 = vmatpush1.bf16.msra.mxu0 %v439
    %1023 = vmatprep.subr.bf16.mxu0 %v500
    %1024 = vmatpush2.bf16.msra.mxu0 %v499
    %1025 = vmatprep.subr.bf16.mxu0 %v496
    %1026 = vmatpush2.bf16.msra.mxu0 %v495
    %1027 = vmatprep.subr.bf16.mxu0 %v492
    %1028 = vmatpush2.bf16.msra.mxu0 %v491
    %1029 = vmatprep.subr.bf16.mxu0 %v488
    %1030 = vmatpush2.bf16.msra.mxu0 %v487
    %1031 = vmatprep.subr.bf16.mxu0 %v484
    %1032 = vmatpush2.bf16.msra.mxu0 %v483
    %1033 = vmatprep.subr.bf16.mxu0 %v480
    %1034 = vmatpush2.bf16.msra.mxu0 %v479
    %1035 = vmatprep.subr.bf16.mxu0 %v476
    %1036 = vmatpush2.bf16.msra.mxu0 %v475
    %1037 = vmatprep.subr.bf16.mxu0 %v472
    %1038 = vmatpush2.bf16.msra.mxu0 %v471
    %1039 = vmatprep.mubr.bf16.mxu0 %v1006
    %1040 = vmatmul.mubr.bf16.gmra.mxu0 %v1005
    %v1041 = vpop.f32.mrf.mxu0
    %v1042 = vadd.f32 %v227, %v1041
    %v1043 = vpop.f32.mrf.mxu0
    %v1044 = vadd.f32 %v231, %v1043
    %v1045 = vpop.f32.mrf.mxu0
    %v1046 = vpop.f32.mrf.mxu0
    %1047 = vdwg.mxu0
    %1048 = vmatprep.subr.bf16.mxu0 %v470
    %1049 = vmatpush1.bf16.msra.mxu0 %v469
    %1050 = vmatprep.subr.bf16.mxu0 %v466
    %1051 = vmatpush1.bf16.msra.mxu0 %v465
    %1052 = vmatprep.subr.bf16.mxu0 %v462
    %1053 = vmatpush1.bf16.msra.mxu0 %v461
    %1054 = vmatprep.subr.bf16.mxu0 %v458
    %1055 = vmatpush1.bf16.msra.mxu0 %v457
    %1056 = vmatprep.subr.bf16.mxu0 %v454
    %1057 = vmatpush1.bf16.msra.mxu0 %v453
    %1058 = vmatprep.subr.bf16.mxu0 %v450
    %1059 = vmatpush1.bf16.msra.mxu0 %v449
    %1060 = vmatprep.subr.bf16.mxu0 %v446
    %1061 = vmatpush1.bf16.msra.mxu0 %v445
    %1062 = vmatprep.subr.bf16.mxu0 %v442
    %1063 = vmatpush1.bf16.msra.mxu0 %v441
    %1064 = vmatprep.subr.bf16.mxu0 %v502
    %1065 = vmatpush2.bf16.msra.mxu0 %v501
    %1066 = vmatprep.subr.bf16.mxu0 %v498
    %1067 = vmatpush2.bf16.msra.mxu0 %v497
    %1068 = vmatprep.subr.bf16.mxu0 %v494
    %1069 = vmatpush2.bf16.msra.mxu0 %v493
    %1070 = vmatprep.subr.bf16.mxu0 %v490
    %1071 = vmatpush2.bf16.msra.mxu0 %v489
    %1072 = vmatprep.subr.bf16.mxu0 %v486
    %1073 = vmatpush2.bf16.msra.mxu0 %v485
    %1074 = vmatprep.subr.bf16.mxu0 %v482
    %1075 = vmatpush2.bf16.msra.mxu0 %v481
    %1076 = vmatprep.subr.bf16.mxu0 %v478
    %1077 = vmatpush2.bf16.msra.mxu0 %v477
    %1078 = vmatprep.subr.bf16.mxu0 %v474
    %1079 = vmatpush2.bf16.msra.mxu0 %v473
    %1080 = vmatprep.mubr.bf16.mxu0 %v1006
    %1081 = vmatmul.mubr.bf16.gmra.mxu0 %v1005
    %v1082 = vpop.f32.mrf.mxu0
    %v1083 = vadd.f32 %v235, %v1082
    %v1084 = vpop.f32.mrf.mxu0
    %v1085 = vadd.f32 %v239, %v1084
    %v1086 = vpop.f32.mrf.mxu0
    %v1087 = vpop.f32.mrf.mxu0
    %1088 = vdwg.mxu0
    %v1089 = vxor.u32 %v1042, 2147483648
    %v1090 = vmul.f32 %v1089, 1.442695
    %v1091 = vpow.pop %v1090
    %v1092 = vadd.f32 %v1091, 1.0
    %v1093 = vrcp.pop %v1092
    %v1094 = vmul.f32 1.0, %v1093
    %v1095 = vxor.u32 %v1044, 2147483648
    %v1096 = vmul.f32 %v1095, 1.442695
    %v1097 = vpow.pop %v1096
    %v1098 = vadd.f32 %v1097, 1.0
    %v1099 = vrcp.pop %v1098
    %v1100 = vmul.f32 1.0, %v1099
    %v1101 = vtanh.pop %v1083
    %v1102 = vxor.u32 %v1085, 2147483648
    %v1103 = vmul.f32 %v1102, 1.442695
    %v1104 = vpow.pop %v1103
    %v1105 = vadd.f32 %v1104, 1.0
    %v1106 = vrcp.pop %v1105
    %v1107 = vmul.f32 1.0, %v1106
    %v1108 = vmul.f32 %v1100, %v1000
    %v1109 = vmul.f32 %v1094, %v1101
    %v1110 = vadd.f32 %v1108, %v1109
    %v1111 = vtanh.pop %v1110
    %v1112 = vmul.f32 %v1107, %v1111
    %s1113 = scalar_lea.vmem [#allocation2], 40
    %v1114 = vld [vmem:[%s1113] sm:$0xff]
    %v1115 = vpack.c.bf16 %v1114, %v1114
    %v1116 = vpack.c.bf16 %v1112, %v1112
    %1117 = vmatprep.subr.bf16.mxu0 %v468
    %1118 = vmatpush1.bf16.msra.mxu0 %v467
    %1119 = vmatprep.subr.bf16.mxu0 %v464
    %1120 = vmatpush1.bf16.msra.mxu0 %v463
    %1121 = vmatprep.subr.bf16.mxu0 %v460
    %1122 = vmatpush1.bf16.msra.mxu0 %v459
    %1123 = vmatprep.subr.bf16.mxu0 %v456
    %1124 = vmatpush1.bf16.msra.mxu0 %v455
    %1125 = vmatprep.subr.bf16.mxu0 %v452
    %1126 = vmatpush1.bf16.msra.mxu0 %v451
    %1127 = vmatprep.subr.bf16.mxu0 %v448
    %1128 = vmatpush1.bf16.msra.mxu0 %v447
    %1129 = vmatprep.subr.bf16.mxu0 %v444
    %1130 = vmatpush1.bf16.msra.mxu0 %v443
    %1131 = vmatprep.subr.bf16.mxu0 %v440
    %1132 = vmatpush1.bf16.msra.mxu0 %v439
    %1133 = vmatprep.subr.bf16.mxu0 %v500
    %1134 = vmatpush2.bf16.msra.mxu0 %v499
    %1135 = vmatprep.subr.bf16.mxu0 %v496
    %1136 = vmatpush2.bf16.msra.mxu0 %v495
    %1137 = vmatprep.subr.bf16.mxu0 %v492
    %1138 = vmatpush2.bf16.msra.mxu0 %v491
    %1139 = vmatprep.subr.bf16.mxu0 %v488
    %1140 = vmatpush2.bf16.msra.mxu0 %v487
    %1141 = vmatprep.subr.bf16.mxu0 %v484
    %1142 = vmatpush2.bf16.msra.mxu0 %v483
    %1143 = vmatprep.subr.bf16.mxu0 %v480
    %1144 = vmatpush2.bf16.msra.mxu0 %v479
    %1145 = vmatprep.subr.bf16.mxu0 %v476
    %1146 = vmatpush2.bf16.msra.mxu0 %v475
    %1147 = vmatprep.subr.bf16.mxu0 %v472
    %1148 = vmatpush2.bf16.msra.mxu0 %v471
    %1149 = vmatprep.mubr.bf16.mxu0 %v1116
    %1150 = vmatmul.mubr.bf16.gmra.mxu0 %v1115
    %v1151 = vpop.f32.mrf.mxu0
    %v1152 = vadd.f32 %v227, %v1151
    %v1153 = vpop.f32.mrf.mxu0
    %v1154 = vadd.f32 %v231, %v1153
    %v1155 = vpop.f32.mrf.mxu0
    %v1156 = vpop.f32.mrf.mxu0
    %1157 = vdwg.mxu0
    %1158 = vmatprep.subr.bf16.mxu0 %v470
    %1159 = vmatpush1.bf16.msra.mxu0 %v469
    %1160 = vmatprep.subr.bf16.mxu0 %v466
    %1161 = vmatpush1.bf16.msra.mxu0 %v465
    %1162 = vmatprep.subr.bf16.mxu0 %v462
    %1163 = vmatpush1.bf16.msra.mxu0 %v461
    %1164 = vmatprep.subr.bf16.mxu0 %v458
    %1165 = vmatpush1.bf16.msra.mxu0 %v457
    %1166 = vmatprep.subr.bf16.mxu0 %v454
    %1167 = vmatpush1.bf16.msra.mxu0 %v453
    %1168 = vmatprep.subr.bf16.mxu0 %v450
    %1169 = vmatpush1.bf16.msra.mxu0 %v449
    %1170 = vmatprep.subr.bf16.mxu0 %v446
    %1171 = vmatpush1.bf16.msra.mxu0 %v445
    %1172 = vmatprep.subr.bf16.mxu0 %v442
    %1173 = vmatpush1.bf16.msra.mxu0 %v441
    %1174 = vmatprep.subr.bf16.mxu0 %v502
    %1175 = vmatpush2.bf16.msra.mxu0 %v501
    %1176 = vmatprep.subr.bf16.mxu0 %v498
    %1177 = vmatpush2.bf16.msra.mxu0 %v497
    %1178 = vmatprep.subr.bf16.mxu0 %v494
    %1179 = vmatpush2.bf16.msra.mxu0 %v493
    %1180 = vmatprep.subr.bf16.mxu0 %v490
    %1181 = vmatpush2.bf16.msra.mxu0 %v489
    %1182 = vmatprep.subr.bf16.mxu0 %v486
    %1183 = vmatpush2.bf16.msra.mxu0 %v485
    %1184 = vmatprep.subr.bf16.mxu0 %v482
    %1185 = vmatpush2.bf16.msra.mxu0 %v481
    %1186 = vmatprep.subr.bf16.mxu0 %v478
    %1187 = vmatpush2.bf16.msra.mxu0 %v477
    %1188 = vmatprep.subr.bf16.mxu0 %v474
    %1189 = vmatpush2.bf16.msra.mxu0 %v473
    %1190 = vmatprep.mubr.bf16.mxu0 %v1116
    %1191 = vmatmul.mubr.bf16.gmra.mxu0 %v1115
    %v1192 = vpop.f32.mrf.mxu0
    %v1193 = vadd.f32 %v235, %v1192
    %v1194 = vpop.f32.mrf.mxu0
    %v1195 = vadd.f32 %v239, %v1194
    %v1196 = vpop.f32.mrf.mxu0
    %v1197 = vpop.f32.mrf.mxu0
    %1198 = vdwg.mxu0
    %v1199 = vxor.u32 %v1152, 2147483648
    %v1200 = vmul.f32 %v1199, 1.442695
    %v1201 = vpow.pop %v1200
    %v1202 = vadd.f32 %v1201, 1.0
    %v1203 = vrcp.pop %v1202
    %v1204 = vmul.f32 1.0, %v1203
    %v1205 = vxor.u32 %v1154, 2147483648
    %v1206 = vmul.f32 %v1205, 1.442695
    %v1207 = vpow.pop %v1206
    %v1208 = vadd.f32 %v1207, 1.0
    %v1209 = vrcp.pop %v1208
    %v1210 = vmul.f32 1.0, %v1209
    %v1211 = vtanh.pop %v1193
    %v1212 = vxor.u32 %v1195, 2147483648
    %v1213 = vmul.f32 %v1212, 1.442695
    %v1214 = vpow.pop %v1213
    %v1215 = vadd.f32 %v1214, 1.0
    %v1216 = vrcp.pop %v1215
    %v1217 = vmul.f32 1.0, %v1216
    %v1218 = vmul.f32 %v1210, %v1110
    %v1219 = vmul.f32 %v1204, %v1211
    %v1220 = vadd.f32 %v1218, %v1219
    %v1221 = vtanh.pop %v1220
    %v1222 = vmul.f32 %v1217, %v1221
    %s1223 = scalar_lea.vmem [#allocation2], 48
    %v1224 = vld [vmem:[%s1223] sm:$0xff]
    %v1225 = vpack.c.bf16 %v1224, %v1224
    %v1226 = vpack.c.bf16 %v1222, %v1222
    %1227 = vmatprep.subr.bf16.mxu0 %v468
    %1228 = vmatpush1.bf16.msra.mxu0 %v467
    %1229 = vmatprep.subr.bf16.mxu0 %v464
    %1230 = vmatpush1.bf16.msra.mxu0 %v463
    %1231 = vmatprep.subr.bf16.mxu0 %v460
    %1232 = vmatpush1.bf16.msra.mxu0 %v459
    %1233 = vmatprep.subr.bf16.mxu0 %v456
    %1234 = vmatpush1.bf16.msra.mxu0 %v455
    %1235 = vmatprep.subr.bf16.mxu0 %v452
    %1236 = vmatpush1.bf16.msra.mxu0 %v451
    %1237 = vmatprep.subr.bf16.mxu0 %v448
    %1238 = vmatpush1.bf16.msra.mxu0 %v447
    %1239 = vmatprep.subr.bf16.mxu0 %v444
    %1240 = vmatpush1.bf16.msra.mxu0 %v443
    %1241 = vmatprep.subr.bf16.mxu0 %v440
    %1242 = vmatpush1.bf16.msra.mxu0 %v439
    %1243 = vmatprep.subr.bf16.mxu0 %v500
    %1244 = vmatpush2.bf16.msra.mxu0 %v499
    %1245 = vmatprep.subr.bf16.mxu0 %v496
    %1246 = vmatpush2.bf16.msra.mxu0 %v495
    %1247 = vmatprep.subr.bf16.mxu0 %v492
    %1248 = vmatpush2.bf16.msra.mxu0 %v491
    %1249 = vmatprep.subr.bf16.mxu0 %v488
    %1250 = vmatpush2.bf16.msra.mxu0 %v487
    %1251 = vmatprep.subr.bf16.mxu0 %v484
    %1252 = vmatpush2.bf16.msra.mxu0 %v483
    %1253 = vmatprep.subr.bf16.mxu0 %v480
    %1254 = vmatpush2.bf16.msra.mxu0 %v479
    %1255 = vmatprep.subr.bf16.mxu0 %v476
    %1256 = vmatpush2.bf16.msra.mxu0 %v475
    %1257 = vmatprep.subr.bf16.mxu0 %v472
    %1258 = vmatpush2.bf16.msra.mxu0 %v471
    %1259 = vmatprep.mubr.bf16.mxu0 %v1226
    %1260 = vmatmul.mubr.bf16.gmra.mxu0 %v1225
    %v1261 = vpop.f32.mrf.mxu0
    %v1262 = vadd.f32 %v227, %v1261
    %v1263 = vpop.f32.mrf.mxu0
    %v1264 = vadd.f32 %v231, %v1263
    %v1265 = vpop.f32.mrf.mxu0
    %v1266 = vpop.f32.mrf.mxu0
    %1267 = vdwg.mxu0
    %1268 = vmatprep.subr.bf16.mxu0 %v470
    %1269 = vmatpush1.bf16.msra.mxu0 %v469
    %1270 = vmatprep.subr.bf16.mxu0 %v466
    %1271 = vmatpush1.bf16.msra.mxu0 %v465
    %1272 = vmatprep.subr.bf16.mxu0 %v462
    %1273 = vmatpush1.bf16.msra.mxu0 %v461
    %1274 = vmatprep.subr.bf16.mxu0 %v458
    %1275 = vmatpush1.bf16.msra.mxu0 %v457
    %1276 = vmatprep.subr.bf16.mxu0 %v454
    %1277 = vmatpush1.bf16.msra.mxu0 %v453
    %1278 = vmatprep.subr.bf16.mxu0 %v450
    %1279 = vmatpush1.bf16.msra.mxu0 %v449
    %1280 = vmatprep.subr.bf16.mxu0 %v446
    %1281 = vmatpush1.bf16.msra.mxu0 %v445
    %1282 = vmatprep.subr.bf16.mxu0 %v442
    %1283 = vmatpush1.bf16.msra.mxu0 %v441
    %1284 = vmatprep.subr.bf16.mxu0 %v502
    %1285 = vmatpush2.bf16.msra.mxu0 %v501
    %1286 = vmatprep.subr.bf16.mxu0 %v498
    %1287 = vmatpush2.bf16.msra.mxu0 %v497
    %1288 = vmatprep.subr.bf16.mxu0 %v494
    %1289 = vmatpush2.bf16.msra.mxu0 %v493
    %1290 = vmatprep.subr.bf16.mxu0 %v490
    %1291 = vmatpush2.bf16.msra.mxu0 %v489
    %1292 = vmatprep.subr.bf16.mxu0 %v486
    %1293 = vmatpush2.bf16.msra.mxu0 %v485
    %1294 = vmatprep.subr.bf16.mxu0 %v482
    %1295 = vmatpush2.bf16.msra.mxu0 %v481
    %1296 = vmatprep.subr.bf16.mxu0 %v478
    %1297 = vmatpush2.bf16.msra.mxu0 %v477
    %1298 = vmatprep.subr.bf16.mxu0 %v474
    %1299 = vmatpush2.bf16.msra.mxu0 %v473
    %1300 = vmatprep.mubr.bf16.mxu0 %v1226
    %1301 = vmatmul.mubr.bf16.gmra.mxu0 %v1225
    %v1302 = vpop.f32.mrf.mxu0
    %v1303 = vadd.f32 %v235, %v1302
    %v1304 = vpop.f32.mrf.mxu0
    %v1305 = vadd.f32 %v239, %v1304
    %v1306 = vpop.f32.mrf.mxu0
    %v1307 = vpop.f32.mrf.mxu0
    %1308 = vdwg.mxu0
    %v1309 = vxor.u32 %v1262, 2147483648
    %v1310 = vmul.f32 %v1309, 1.442695
    %v1311 = vpow.pop %v1310
    %v1312 = vadd.f32 %v1311, 1.0
    %v1313 = vrcp.pop %v1312
    %v1314 = vmul.f32 1.0, %v1313
    %v1315 = vxor.u32 %v1264, 2147483648
    %v1316 = vmul.f32 %v1315, 1.442695
    %v1317 = vpow.pop %v1316
    %v1318 = vadd.f32 %v1317, 1.0
    %v1319 = vrcp.pop %v1318
    %v1320 = vmul.f32 1.0, %v1319
    %v1321 = vtanh.pop %v1303
    %v1322 = vxor.u32 %v1305, 2147483648
    %v1323 = vmul.f32 %v1322, 1.442695
    %v1324 = vpow.pop %v1323
    %v1325 = vadd.f32 %v1324, 1.0
    %v1326 = vrcp.pop %v1325
    %v1327 = vmul.f32 1.0, %v1326
    %v1328 = vmul.f32 %v1320, %v1220
    %v1329 = vmul.f32 %v1314, %v1321
    %v1330 = vadd.f32 %v1328, %v1329
    %v1331 = vtanh.pop %v1330
    %v1332 = vmul.f32 %v1327, %v1331
    %s1333 = scalar_lea.vmem [#allocation2], 56
    %v1334 = vld [vmem:[%s1333] sm:$0xff]
    %v1335 = vpack.c.bf16 %v1334, %v1334
    %v1336 = vpack.c.bf16 %v1332, %v1332
    %1337 = vmatprep.subr.bf16.mxu0 %v468
    %1338 = vmatpush1.bf16.msra.mxu0 %v467
    %1339 = vmatprep.subr.bf16.mxu0 %v464
    %1340 = vmatpush1.bf16.msra.mxu0 %v463
    %1341 = vmatprep.subr.bf16.mxu0 %v460
    %1342 = vmatpush1.bf16.msra.mxu0 %v459
    %1343 = vmatprep.subr.bf16.mxu0 %v456
    %1344 = vmatpush1.bf16.msra.mxu0 %v455
    %1345 = vmatprep.subr.bf16.mxu0 %v452
    %1346 = vmatpush1.bf16.msra.mxu0 %v451
    %1347 = vmatprep.subr.bf16.mxu0 %v448
    %1348 = vmatpush1.bf16.msra.mxu0 %v447
    %1349 = vmatprep.subr.bf16.mxu0 %v444
    %1350 = vmatpush1.bf16.msra.mxu0 %v443
    %1351 = vmatprep.subr.bf16.mxu0 %v440
    %1352 = vmatpush1.bf16.msra.mxu0 %v439
    %1353 = vmatprep.subr.bf16.mxu0 %v500
    %1354 = vmatpush2.bf16.msra.mxu0 %v499
    %1355 = vmatprep.subr.bf16.mxu0 %v496
    %1356 = vmatpush2.bf16.msra.mxu0 %v495
    %1357 = vmatprep.subr.bf16.mxu0 %v492
    %1358 = vmatpush2.bf16.msra.mxu0 %v491
    %1359 = vmatprep.subr.bf16.mxu0 %v488
    %1360 = vmatpush2.bf16.msra.mxu0 %v487
    %1361 = vmatprep.subr.bf16.mxu0 %v484
    %1362 = vmatpush2.bf16.msra.mxu0 %v483
    %1363 = vmatprep.subr.bf16.mxu0 %v480
    %1364 = vmatpush2.bf16.msra.mxu0 %v479
    %1365 = vmatprep.subr.bf16.mxu0 %v476
    %1366 = vmatpush2.bf16.msra.mxu0 %v475
    %1367 = vmatprep.subr.bf16.mxu0 %v472
    %1368 = vmatpush2.bf16.msra.mxu0 %v471
    %1369 = vmatprep.mubr.bf16.mxu0 %v1336
    %1370 = vmatmul.mubr.bf16.gmra.mxu0 %v1335
    %v1371 = vpop.f32.mrf.mxu0
    %v1372 = vadd.f32 %v227, %v1371
    %v1373 = vpop.f32.mrf.mxu0
    %v1374 = vadd.f32 %v231, %v1373
    %v1375 = vpop.f32.mrf.mxu0
    %v1376 = vpop.f32.mrf.mxu0
    %1377 = vdwg.mxu0
    %1378 = vmatprep.subr.bf16.mxu0 %v470
    %1379 = vmatpush1.bf16.msra.mxu0 %v469
    %1380 = vmatprep.subr.bf16.mxu0 %v466
    %1381 = vmatpush1.bf16.msra.mxu0 %v465
    %1382 = vmatprep.subr.bf16.mxu0 %v462
    %1383 = vmatpush1.bf16.msra.mxu0 %v461
    %1384 = vmatprep.subr.bf16.mxu0 %v458
    %1385 = vmatpush1.bf16.msra.mxu0 %v457
    %1386 = vmatprep.subr.bf16.mxu0 %v454
    %1387 = vmatpush1.bf16.msra.mxu0 %v453
    %1388 = vmatprep.subr.bf16.mxu0 %v450
    %1389 = vmatpush1.bf16.msra.mxu0 %v449
    %1390 = vmatprep.subr.bf16.mxu0 %v446
    %1391 = vmatpush1.bf16.msra.mxu0 %v445
    %1392 = vmatprep.subr.bf16.mxu0 %v442
    %1393 = vmatpush1.bf16.msra.mxu0 %v441
    %1394 = vmatprep.subr.bf16.mxu0 %v502
    %1395 = vmatpush2.bf16.msra.mxu0 %v501
    %1396 = vmatprep.subr.bf16.mxu0 %v498
    %1397 = vmatpush2.bf16.msra.mxu0 %v497
    %1398 = vmatprep.subr.bf16.mxu0 %v494
    %1399 = vmatpush2.bf16.msra.mxu0 %v493
    %1400 = vmatprep.subr.bf16.mxu0 %v490
    %1401 = vmatpush2.bf16.msra.mxu0 %v489
    %1402 = vmatprep.subr.bf16.mxu0 %v486
    %1403 = vmatpush2.bf16.msra.mxu0 %v485
    %1404 = vmatprep.subr.bf16.mxu0 %v482
    %1405 = vmatpush2.bf16.msra.mxu0 %v481
    %1406 = vmatprep.subr.bf16.mxu0 %v478
    %1407 = vmatpush2.bf16.msra.mxu0 %v477
    %1408 = vmatprep.subr.bf16.mxu0 %v474
    %1409 = vmatpush2.bf16.msra.mxu0 %v473
    %1410 = vmatprep.mubr.bf16.mxu0 %v1336
    %1411 = vmatmul.mubr.bf16.gmra.mxu0 %v1335
    %v1412 = vpop.f32.mrf.mxu0
    %v1413 = vadd.f32 %v235, %v1412
    %v1414 = vpop.f32.mrf.mxu0
    %v1415 = vadd.f32 %v239, %v1414
    %v1416 = vpop.f32.mrf.mxu0
    %v1417 = vpop.f32.mrf.mxu0
    %1418 = vdwg.mxu0
    %v1419 = vxor.u32 %v1372, 2147483648
    %v1420 = vmul.f32 %v1419, 1.442695
    %v1421 = vpow.pop %v1420
    %v1422 = vadd.f32 %v1421, 1.0
    %v1423 = vrcp.pop %v1422
    %v1424 = vmul.f32 1.0, %v1423
    %v1425 = vxor.u32 %v1374, 2147483648
    %v1426 = vmul.f32 %v1425, 1.442695
    %v1427 = vpow.pop %v1426
    %v1428 = vadd.f32 %v1427, 1.0
    %v1429 = vrcp.pop %v1428
    %v1430 = vmul.f32 1.0, %v1429
    %v1431 = vtanh.pop %v1413
    %v1432 = vxor.u32 %v1415, 2147483648
    %v1433 = vmul.f32 %v1432, 1.442695
    %v1434 = vpow.pop %v1433
    %v1435 = vadd.f32 %v1434, 1.0
    %v1436 = vrcp.pop %v1435
    %v1437 = vmul.f32 1.0, %v1436
    %v1438 = vmul.f32 %v1430, %v1330
    %v1439 = vmul.f32 %v1424, %v1431
    %v1440 = vadd.f32 %v1438, %v1439
    %v1441 = vtanh.pop %v1440
    %v1442 = vmul.f32 %v1437, %v1441
    %v1443 = vpack.c.bf16 %v1442, %v1442
    %v1444 = vld [vmem:[#allocation10] sm:$0xf]
    %v1445 = vld [vmem:[#allocation10 + $0x4] sm:$0xf]
    %v1446 = vld [vmem:[#allocation10 + $0x8] sm:$0xf]
    %v1447 = vld [vmem:[#allocation10 + $0xc] sm:$0xf]
    %v1448 = vld [vmem:[#allocation10 + $0x10] sm:$0xf]
    %v1449 = vld [vmem:[#allocation10 + $0x14] sm:$0xf]
    %v1450 = vld [vmem:[#allocation10 + $0x18] sm:$0xf]
    %v1451 = vld [vmem:[#allocation10 + $0x1c] sm:$0xf]
    %v1452 = vld [vmem:[#allocation10 + $0x20] sm:$0xf]
    %v1453 = vld [vmem:[#allocation10 + $0x24] sm:$0xf]
    %v1454 = vld [vmem:[#allocation10 + $0x28] sm:$0xf]
    %v1455 = vld [vmem:[#allocation10 + $0x2c] sm:$0xf]
    %v1456 = vld [vmem:[#allocation10 + $0x30] sm:$0xf]
    %v1457 = vld [vmem:[#allocation10 + $0x34] sm:$0xf]
    %v1458 = vld [vmem:[#allocation10 + $0x38] sm:$0xf]
    %v1459 = vld [vmem:[#allocation10 + $0x3c] sm:$0xf]
    %v1460 = vld [vmem:[%s5] sm:$0x1]
    %v1462 = vlaneseq
    %v1463 = vshrl.u32 %v1462, 7
    %v1464 = vsub.s32 0, %v1463
    %v1465 = vrot.slane %v1460, %v1464
    %v1483 = vunpack.c.l.b16 %v1444
    %v1484 = vunpack.c.l.b16 %v1445
    %v1485 = vunpack.c.l.b16 %v1446
    %v1486 = vunpack.c.l.b16 %v1447
    %v1487 = vunpack.c.l.b16 %v1448
    %v1488 = vunpack.c.l.b16 %v1449
    %v1489 = vunpack.c.l.b16 %v1450
    %v1490 = vunpack.c.l.b16 %v1451
    %v1491 = vunpack.c.l.b16 %v1452
    %v1492 = vunpack.c.l.b16 %v1453
    %v1493 = vunpack.c.l.b16 %v1454
    %v1494 = vunpack.c.l.b16 %v1455
    %v1495 = vunpack.c.l.b16 %v1456
    %v1496 = vunpack.c.l.b16 %v1457
    %v1497 = vunpack.c.l.b16 %v1458
    %v1498 = vunpack.c.l.b16 %v1459
    %v1499 = vpack.c.b16 %v1484, %v1483
    %v1500 = vpack.c.b16 %v1486, %v1485
    %v1501 = vpack.c.b16 %v1488, %v1487
    %v1502 = vpack.c.b16 %v1490, %v1489
    %v1503 = vpack.c.b16 %v1492, %v1491
    %v1504 = vpack.c.b16 %v1494, %v1493
    %v1505 = vpack.c.b16 %v1496, %v1495
    %v1506 = vpack.c.b16 %v1498, %v1497
    %1515 = vmatprep.subr.bf16.mxu0 0
    %1516 = vmatpush1.bf16.msra.mxu0 %v1506
    %1517 = vmatprep.subr.bf16.mxu0 0
    %1518 = vmatpush1.bf16.msra.mxu0 %v1505
    %1519 = vmatprep.subr.bf16.mxu0 0
    %1520 = vmatpush1.bf16.msra.mxu0 %v1504
    %1521 = vmatprep.subr.bf16.mxu0 0
    %1522 = vmatpush1.bf16.msra.mxu0 %v1503
    %1523 = vmatprep.subr.bf16.mxu0 0
    %1524 = vmatpush1.bf16.msra.mxu0 %v1502
    %1525 = vmatprep.subr.bf16.mxu0 0
    %1526 = vmatpush1.bf16.msra.mxu0 %v1501
    %1527 = vmatprep.subr.bf16.mxu0 0
    %1528 = vmatpush1.bf16.msra.mxu0 %v1500
    %1529 = vmatprep.subr.bf16.mxu0 0
    %1530 = vmatpush1.bf16.msra.mxu0 %v1499
    %1531 = vmatprep.subr.bf16.mxu0 0
    %1532 = vmatpush2.bf16.msra.mxu0 0
    %1533 = vmatprep.subr.bf16.mxu0 0
    %1534 = vmatpush2.bf16.msra.mxu0 0
    %1535 = vmatprep.subr.bf16.mxu0 0
    %1536 = vmatpush2.bf16.msra.mxu0 0
    %1537 = vmatprep.subr.bf16.mxu0 0
    %1538 = vmatpush2.bf16.msra.mxu0 0
    %1539 = vmatprep.subr.bf16.mxu0 0
    %1540 = vmatpush2.bf16.msra.mxu0 0
    %1541 = vmatprep.subr.bf16.mxu0 0
    %1542 = vmatpush2.bf16.msra.mxu0 0
    %1543 = vmatprep.subr.bf16.mxu0 0
    %1544 = vmatpush2.bf16.msra.mxu0 0
    %1545 = vmatprep.subr.bf16.mxu0 0
    %1546 = vmatpush2.bf16.msra.mxu0 0
    %1547 = vmatprep.mubr.bf16.mxu0 0
    %1548 = vmatmul.mubr.bf16.gmra.mxu0 %v1443
    %v1549 = vpop.f32.mrf.mxu0
    %v1550 = vadd.f32 %v1465, %v1549
    %v1551 = vpop.f32.mrf.mxu0
    %v1552 = vpop.f32.mrf.mxu0
    %v1553 = vpop.f32.mrf.mxu0
    %1554 = vdwg.mxu0
    %1555 = vst [vmem:[#allocation11] sm:$0xff] %v1550
    // Predicated region
    $region34: #{tpu_custom_call.1} parent=1 // pred_check
      _
    $region35: #{tpu_custom_call.1} parent=1 // pred_check_branch
      %1557 = sbr.rel (0) target = $region37
    $region36: #{tpu_custom_call.1} parent=1 // pred_region
      %s1559 = ssub.s32 128, 128
      %1560 = vsyncadd [#allocation7], %s1559
      %s1562 = sshll.u32 [#allocation11], 4
      %s1563 = int_to_ptr.vmem [resolvable:$true] %s1562
      %1565 = dma.vmem_to_hbm [thread:$0]  %s1563, 128, %s6, [#allocation7]
    $region37: #{tpu_custom_call.1} parent=1 // pred_fallthru
      _
    // Predicated region
    $region38: #{tpu_custom_call.1} parent=1 // pred_check
      _
    $region39: #{tpu_custom_call.1} parent=1 // pred_check_branch
      %1567 = sbr.rel (0) target = $region41
    $region40: #{tpu_custom_call.1} parent=1 // pred_region
      %1568 = dma.done [#allocation7], 128
    $region41: #{tpu_custom_call.1} parent=1 // pred_fallthru
      _
    %1569 = vsyncpa [#allocation6], 1
    %1570 = vsyncpa [#allocation9], 1
    %1571 = vsyncpa [#allocation7], 1

</llo_original>
